<compile_context>
chip_gen: v5e
topology: v5e:2x2
jax: 0.10.0
libtpu: 0.0.40
codegen_flags: <defaults>
</compile_context>

<pallas_src>
import functools
import math

import jax
import jax.numpy as jnp
from jax.experimental import pallas as pl
from jax.experimental.pallas import tpu as pltpu


# ----------------------------- Pallas kernel --------------------------------


def _layer_norm(x, g, b, eps=1e-5):
    mu = jnp.mean(x, axis=-1, keepdims=True)
    var = jnp.mean((x - mu) ** 2, axis=-1, keepdims=True)
    return (x - mu) * jax.lax.rsqrt(var + eps) * g + b


def _head_kernel(*refs, nheads, S, TB, need_weights):
    (z_ref, cls_ref, cos_ref, sina_ref, sinb_ref,
     wqkv_ref, bqkv_ref, wo_ref, bo_ref,
     ln1g_ref, ln1b_ref, w1_ref, b1_ref, w2_ref, b2_ref,
     ln2g_ref, ln2b_ref, wm1_ref, bm1_ref, wm2_ref, bm2_ref) = refs[:21]
    n_out = 2 if need_weights else 1
    logits_ref = refs[21]
    attn_ref = refs[22] if need_weights else None
    xbuf, ctxbuf, clsbuf = refs[21 + n_out:]

    D = z_ref.shape[-1]
    S1 = S + 1
    hd = D // nheads
    bf16 = jnp.bfloat16
    f32 = jnp.float32

    # ---- cls-token concat + rotary PE, fused in-kernel (no extra HBM round trip) ----
    cos = cos_ref[...]          # (S, D)   cos for sequence positions 1..S
    sin_a = sina_ref[...]       # (S, D)   -sin at even lanes, 0 at odd lanes
    sin_b = sinb_ref[...]       # (S, D)   +sin at odd lanes,  0 at even lanes
    cls_row = cls_ref[...]      # (1, D)   rotary at position 0 is the identity
    for b in range(TB):
        zb = z_ref[b]           # (S, D) f32
        # interleaved-pair rotation: out[2i] = x[2i]c - x[2i+1]s ; out[2i+1] = x[2i+1]c + x[2i]s
        zr = (zb * cos
              + pltpu.roll(zb, shift=D - 1, axis=1) * sin_a   # x[j+1] contribution
              + pltpu.roll(zb, shift=1, axis=1) * sin_b)      # x[j-1] contribution
        xbuf[b * S1:b * S1 + 1, :] = cls_row
        xbuf[b * S1 + 1:(b + 1) * S1, :] = zr

    x = xbuf[...]               # (TB*S1, D) f32

    # ---- fused QKV projection: one lane-dense bf16 matmul (scale folded into Wq) ----
    qkv = jnp.dot(x.astype(bf16), wqkv_ref[...],
                  preferred_element_type=f32) + bqkv_ref[...]   # (TB*S1, 3D) f32

    # ---- multi-head attention (scores per example/head; ctx packed into ctxbuf) ----
    inv_h = 1.0 / nheads
    for b in range(TB):
        r0 = b * S1
        p_sum = None
        for h in range(nheads):
            c = h * hd
            qh = qkv[r0:r0 + S1, c:c + hd]
            kh = qkv[r0:r0 + S1, D + c:D + c + hd]
            vh = qkv[r0:r0 + S1, 2 * D + c:2 * D + c + hd]
            sc = jax.lax.dot_general(
                qh.astype(bf16), kh.astype(bf16),
                (((1,), (1,)), ((), ())),
                preferred_element_type=f32)                     # (S1, S1) f32
            m = jnp.max(sc, axis=-1, keepdims=True)
            p = jnp.exp(sc - m)
            p = p * pl.reciprocal(jnp.sum(p, axis=-1, keepdims=True), approx=True)
            if need_weights:
                p_sum = p if p_sum is None else p_sum + p
            ctx = jnp.dot(p.astype(bf16), vh.astype(bf16),
                          preferred_element_type=f32)           # (S1, hd)
            ctxbuf[r0:r0 + S1, c:c + hd] = ctx
        if need_weights:
            attn_ref[0, b, :, :] = p_sum * inv_h                # head-averaged weights

    # ---- fused output projection + residual + LayerNorm 1 ----
    attn_out = jnp.dot(ctxbuf[...].astype(bf16), wo_ref[...],
                       preferred_element_type=f32) + bo_ref[...]
    x1 = _layer_norm(x + attn_out, ln1g_ref[...], ln1b_ref[...])

    # ---- feed-forward (GELU) + residual + LayerNorm 2 ----
    h1 = jnp.dot(x1.astype(bf16), w1_ref[...], preferred_element_type=f32) + b1_ref[...]
    h1 = jax.nn.gelu(h1)
    ff = jnp.dot(h1.astype(bf16), w2_ref[...], preferred_element_type=f32) + b2_ref[...]
    x2 = _layer_norm(x1 + ff, ln2g_ref[...], ln2b_ref[...])

    # ---- classification MLP on the cls rows only (lane-dense padded logits) ----
    for b in range(TB):
        clsbuf[b:b + 1, :] = x2[b * S1:b * S1 + 1, :]
    cls2 = clsbuf[...]                                          # (TB, D)
    hm = jnp.dot(cls2.astype(bf16), wm1_ref[...],
                 preferred_element_type=f32) + bm1_ref[...]
    hm = jax.nn.silu(hm)
    logits_ref[0, :, :] = jnp.dot(hm.astype(bf16), wm2_ref[...],
                                  preferred_element_type=f32) + bm2_ref[...]


# ------------------------------ JAX glue -------------------------------------


def _pick_batch_tile(B, S1):
    """Fold batch into matmul rows, but keep >= 2 grid steps when possible (v7x: 2 TCs)."""
    tb = 1
    for c in range(1, B + 1):
        if B % c:
            continue
        if c * S1 > 256:
            break
        if B >= 2 and B // c < 2:
            continue
        tb = c
    return tb


def classification_head_forward(z, params, *, nheads, is_train):
    """z: (B, S, D) float32. Returns (logits, attn_w_tensor)."""
    B, S, D = z.shape
    S1 = S + 1
    hd = D // nheads
    need_weights = not is_train
    NC = params["wm2"].shape[1]
    NCpad = ((NC + 127) // 128) * 128
    TB = _pick_batch_tile(B, S1)
    G = B // TB

    f32 = jnp.float32
    bf16 = jnp.bfloat16
    scale = 1.0 / math.sqrt(hd)

    # fused QKV weight/bias; 1/sqrt(hd) folded into the Q block; weights in bf16
    wqkv = jnp.concatenate(
        [params["wq"] * scale, params["wk"], params["wv"]], axis=1).astype(bf16)
    bqkv = jnp.concatenate(
        [params["bq"] * scale, params["bk"], params["bv"]], axis=1).astype(f32)
    wo = params["wo"].astype(bf16)
    w1 = params["w1"].astype(bf16)
    w2 = params["w2"].astype(bf16)
    wm1 = params["wm1"].astype(bf16)
    wm2 = jnp.zeros((D, NCpad), f32).at[:, :NC].set(params["wm2"]).astype(bf16)
    bm2 = jnp.zeros((1, NCpad), f32).at[:, :NC].set(params["bm2"])

    # rotary tables for sequence positions 1..S (cls token occupies position 0)
    pos = jnp.arange(1, S + 1, dtype=f32)
    ang = pos[:, None] * params["rot_freqs"][None, :]          # (S, D//2)
    cos = jnp.repeat(jnp.cos(ang), 2, axis=-1)                 # (S, D)
    sin = jnp.repeat(jnp.sin(ang), 2, axis=-1)
    even = (jnp.arange(D) % 2 == 0).astype(f32)[None, :]
    sin_a = -sin * even                                        # feeds even output lanes
    sin_b = sin * (1.0 - even)                                 # feeds odd output lanes

    cls = params["cls_token"].reshape(1, D).astype(f32)

    weights = [wqkv, bqkv, wo, params["bo"], params["ln1g"], params["ln1b"],
               w1, params["b1"], w2, params["b2"], params["ln2g"], params["ln2b"],
               wm1, params["bm1"], wm2, bm2]
    small = [cls, cos, sin_a, sin_b]

    def rep(a):   # whole-array block, replicated across the batch-block grid
        return pl.BlockSpec(a.shape, lambda g, nd=a.ndim: (0,) * nd)

    in_specs = ([pl.BlockSpec((TB, S, D), lambda g: (g, 0, 0))]
                + [rep(a) for a in small]
                + [rep(a) for a in weights])

    out_shapes = [jax.ShapeDtypeStruct((G, TB, NCpad), f32)]
    out_specs = [pl.BlockSpec((1, TB, NCpad), lambda g: (g, 0, 0))]
    if need_weights:
        out_shapes.append(jax.ShapeDtypeStruct((G, TB, S1, S1), f32))
        out_specs.append(pl.BlockSpec((1, TB, S1, S1), lambda g: (g, 0, 0, 0)))

    outs = pl.pallas_call(
        functools.partial(_head_kernel, nheads=nheads, S=S, TB=TB,
                          need_weights=need_weights),
        grid=(G,),
        in_specs=in_specs,
        out_specs=tuple(out_specs),
        out_shape=tuple(out_shapes),
        scratch_shapes=[
            pltpu.VMEM((TB * S1, D), f32),   # xbuf: cls + rotated z
            pltpu.VMEM((TB * S1, D), f32),   # ctxbuf: packed attention contexts
            pltpu.VMEM((TB, D), f32),        # clsbuf: cls rows for the head MLP
        ],
        compiler_params=pltpu.CompilerParams(
            dimension_semantics=("parallel",),
            vmem_limit_bytes=32 * 1024 * 1024,   # safe on v5e/v6e/v7x; usage here is tiny
        ),
    )(z, cls, cos, sin_a, sin_b, *weights)

    logits = outs[0].reshape(B, NCpad)[:, :NC]
    if need_weights:
        attn = outs[1].reshape(B, S1, S1)
        attn_w_tensor = attn[:, None, :, :]      # (B, n_layers=1, S+1, S+1)
    else:
        attn_w_tensor = None
    return logits, attn_w_tensor


# --------------------------- parameter init ----------------------------------


def init_params(key, D, nheads, n_clusters, ffn_hidden):
    ks = jax.random.split(key, 12)
    std = 0.02
    f32 = jnp.float32
    p = {}
    p["cls_token"] = jax.random.normal(ks[0], (1, 1, D), f32)
    # RotaryEmbedding(learned_freq=True) init: 1 / theta^(2i/d), theta=10000
    p["rot_freqs"] = 1.0 / (10000.0 ** (jnp.arange(0, D, 2, dtype=f32) / D))
    # attention (full (D, D) matrices; heads are contiguous column blocks)
    p["wq"] = std * jax.random.normal(ks[1], (D, D), f32)
    p["wk"] = std * jax.random.normal(ks[2], (D, D), f32)
    p["wv"] = std * jax.random.normal(ks[3], (D, D), f32)
    p["bq"] = jnp.zeros((1, D), f32)
    p["bk"] = jnp.zeros((1, D), f32)
    p["bv"] = jnp.zeros((1, D), f32)
    p["wo"] = std * jax.random.normal(ks[4], (D, D), f32)
    p["bo"] = jnp.zeros((1, D), f32)
    # layer norms
    p["ln1g"] = jnp.ones((1, D), f32)
    p["ln1b"] = jnp.zeros((1, D), f32)
    p["ln2g"] = jnp.ones((1, D), f32)
    p["ln2b"] = jnp.zeros((1, D), f32)
    # FFN
    p["w1"] = std * jax.random.normal(ks[5], (D, ffn_hidden), f32)
    p["b1"] = jnp.zeros((1, ffn_hidden), f32)
    p["w2"] = std * jax.random.normal(ks[6], (ffn_hidden, D), f32)
    p["b2"] = jnp.zeros((1, D), f32)
    # classification MLP: Linear(D, D) -> SiLU -> Linear(D, n_clusters)
    p["wm1"] = std * jax.random.normal(ks[7], (D, D), f32)
    p["bm1"] = jnp.zeros((1, D), f32)
    p["wm2"] = std * jax.random.normal(ks[8], (D, n_clusters), f32)
    p["bm2"] = jnp.zeros((1, n_clusters), f32)
    return p


if __name__ == "__main__":
    B, S, D, H, NC = 4, 8, 32, 4, 8        # batch, seq, latent_ndim, nheads, n_clusters
    FFN_HIDDEN = 4 * D

    key = jax.random.PRNGKey(0)
    kz, kp = jax.random.split(key)
    z = jax.random.normal(kz, (B, S, D), jnp.float32)
    params = init_params(kp, D, H, NC, FFN_HIDDEN)

    # eval path: logits + per-layer attention weights
    logits, attn_w = classification_head_forward(z, params, nheads=H, is_train=False)
    jax.block_until_ready((logits, attn_w))
    assert logits.shape == (B, NC)
    assert attn_w.shape == (B, 1, S + 1, S + 1)

    # train path: attention weights skipped entirely (no wasted compute / writeback)
    logits_t, attn_t = classification_head_forward(z, params, nheads=H, is_train=True)
    jax.block_until_ready(logits_t)
    assert logits_t.shape == (B, NC)
    assert attn_t is None

    print("KERNEL_OK")
</pallas_src>

<mosaic_0001>
module attributes {stable_mosaic.version = 11 : i64} {
  func.func @_head_kernel(%arg0: i32, %arg1: memref<2x8x32xf32, #tpu.memory_space<vmem>>, %arg2: memref<1x32xf32, #tpu.memory_space<vmem>>, %arg3: memref<8x32xf32, #tpu.memory_space<vmem>>, %arg4: memref<8x32xf32, #tpu.memory_space<vmem>>, %arg5: memref<8x32xf32, #tpu.memory_space<vmem>>, %arg6: memref<32x96xbf16, #tpu.memory_space<vmem>>, %arg7: memref<1x96xf32, #tpu.memory_space<vmem>>, %arg8: memref<32x32xbf16, #tpu.memory_space<vmem>>, %arg9: memref<1x32xf32, #tpu.memory_space<vmem>>, %arg10: memref<1x32xf32, #tpu.memory_space<vmem>>, %arg11: memref<1x32xf32, #tpu.memory_space<vmem>>, %arg12: memref<32x128xbf16, #tpu.memory_space<vmem>>, %arg13: memref<1x128xf32, #tpu.memory_space<vmem>>, %arg14: memref<128x32xbf16, #tpu.memory_space<vmem>>, %arg15: memref<1x32xf32, #tpu.memory_space<vmem>>, %arg16: memref<1x32xf32, #tpu.memory_space<vmem>>, %arg17: memref<1x32xf32, #tpu.memory_space<vmem>>, %arg18: memref<32x32xbf16, #tpu.memory_space<vmem>>, %arg19: memref<1x32xf32, #tpu.memory_space<vmem>>, %arg20: memref<32x128xbf16, #tpu.memory_space<vmem>>, %arg21: memref<1x128xf32, #tpu.memory_space<vmem>>, %arg22: memref<1x2x128xf32, #tpu.memory_space<vmem>>, %arg23: memref<1x2x9x9xf32, #tpu.memory_space<vmem>>, %arg24: memref<18x32xf32, #tpu.memory_space<vmem>>, %arg25: memref<18x32xf32, #tpu.memory_space<vmem>>, %arg26: memref<2x32xf32, #tpu.memory_space<vmem>>) attributes {dimension_semantics = [#tpu.dimension_semantics<parallel>], iteration_bounds = array<i64: 2>, scalar_prefetch = 0 : i64, scratch_operands = 3 : i64, tpu.core_type = #tpu.core_type<tc>, window_params = [{transform_indices = @transform_0, window_bounds = array<i64: 2, 8, 32>}, {pipeline_mode = #tpu.pipeline_mode<synchronous>, transform_indices = @transform_1, window_bounds = array<i64: 1, 32>}, {pipeline_mode = #tpu.pipeline_mode<synchronous>, transform_indices = @transform_2, window_bounds = array<i64: 8, 32>}, {pipeline_mode = #tpu.pipeline_mode<synchronous>, transform_indices = @transform_3, window_bounds = array<i64: 8, 32>}, {pipeline_mode = #tpu.pipeline_mode<synchronous>, transform_indices = @transform_4, window_bounds = array<i64: 8, 32>}, {pipeline_mode = #tpu.pipeline_mode<synchronous>, transform_indices = @transform_5, window_bounds = array<i64: 32, 96>}, {pipeline_mode = #tpu.pipeline_mode<synchronous>, transform_indices = @transform_6, window_bounds = array<i64: 1, 96>}, {pipeline_mode = #tpu.pipeline_mode<synchronous>, transform_indices = @transform_7, window_bounds = array<i64: 32, 32>}, {pipeline_mode = #tpu.pipeline_mode<synchronous>, transform_indices = @transform_8, window_bounds = array<i64: 1, 32>}, {pipeline_mode = #tpu.pipeline_mode<synchronous>, transform_indices = @transform_9, window_bounds = array<i64: 1, 32>}, {pipeline_mode = #tpu.pipeline_mode<synchronous>, transform_indices = @transform_10, window_bounds = array<i64: 1, 32>}, {pipeline_mode = #tpu.pipeline_mode<synchronous>, transform_indices = @transform_11, window_bounds = array<i64: 32, 128>}, {pipeline_mode = #tpu.pipeline_mode<synchronous>, transform_indices = @transform_12, window_bounds = array<i64: 1, 128>}, {pipeline_mode = #tpu.pipeline_mode<synchronous>, transform_indices = @transform_13, window_bounds = array<i64: 128, 32>}, {pipeline_mode = #tpu.pipeline_mode<synchronous>, transform_indices = @transform_14, window_bounds = array<i64: 1, 32>}, {pipeline_mode = #tpu.pipeline_mode<synchronous>, transform_indices = @transform_15, window_bounds = array<i64: 1, 32>}, {pipeline_mode = #tpu.pipeline_mode<synchronous>, transform_indices = @transform_16, window_bounds = array<i64: 1, 32>}, {pipeline_mode = #tpu.pipeline_mode<synchronous>, transform_indices = @transform_17, window_bounds = array<i64: 32, 32>}, {pipeline_mode = #tpu.pipeline_mode<synchronous>, transform_indices = @transform_18, window_bounds = array<i64: 1, 32>}, {pipeline_mode = #tpu.pipeline_mode<synchronous>, transform_indices = @transform_19, window_bounds = array<i64: 32, 128>}, {pipeline_mode = #tpu.pipeline_mode<synchronous>, transform_indices = @transform_20, window_bounds = array<i64: 1, 128>}, {transform_indices = @transform_21, window_bounds = array<i64: 1, 2, 128>}, {transform_indices = @transform_22, window_bounds = array<i64: 1, 2, 9, 9>}]} {
    %c0 = arith.constant 0 : index
    %c0_0 = arith.constant 0 : index
    %0 = vector.load %arg3[%c0, %c0_0] : memref<8x32xf32, #tpu.memory_space<vmem>>, vector<8x32xf32>
    %c0_1 = arith.constant 0 : index
    %c0_2 = arith.constant 0 : index
    %1 = vector.load %arg4[%c0_1, %c0_2] : memref<8x32xf32, #tpu.memory_space<vmem>>, vector<8x32xf32>
    %c0_3 = arith.constant 0 : index
    %c0_4 = arith.constant 0 : index
    %2 = vector.load %arg5[%c0_3, %c0_4] : memref<8x32xf32, #tpu.memory_space<vmem>>, vector<8x32xf32>
    %c0_5 = arith.constant 0 : index
    %c0_6 = arith.constant 0 : index
    %3 = vector.load %arg2[%c0_5, %c0_6] : memref<1x32xf32, #tpu.memory_space<vmem>>, vector<1x32xf32>
    %c0_7 = arith.constant 0 : index
    %c0_8 = arith.constant 0 : index
    %c0_9 = arith.constant 0 : index
    %4 = vector.load %arg1[%c0_7, %c0_8, %c0_9] : memref<2x8x32xf32, #tpu.memory_space<vmem>>, vector<1x8x32xf32>
    %5 = vector.shape_cast %4 : vector<1x8x32xf32> to vector<8x32xf32>
    %6 = arith.mulf %5, %0 : vector<8x32xf32>
    %c31_i32 = arith.constant 31 : i32
    %7 = tpu.dynamic_rotate %5 by %c31_i32 dim 1 : vector<8x32xf32>, i32 -> vector<8x32xf32>
    %8 = arith.mulf %7, %1 : vector<8x32xf32>
    %9 = arith.addf %6, %8 : vector<8x32xf32>
    %c1_i32 = arith.constant 1 : i32
    %10 = tpu.dynamic_rotate %5 by %c1_i32 dim 1 : vector<8x32xf32>, i32 -> vector<8x32xf32>
    %11 = arith.mulf %10, %2 : vector<8x32xf32>
    %12 = arith.addf %9, %11 : vector<8x32xf32>
    %c0_10 = arith.constant 0 : index
    %c0_11 = arith.constant 0 : index
    %13 = vector.load %arg24[%c0_10, %c0_11] : memref<18x32xf32, #tpu.memory_space<vmem>>, vector<1x32xf32>
    tpu.vector_store %arg24[%c0_10, %c0_11], %3 {strides = array<i32>} : memref<18x32xf32, #tpu.memory_space<vmem>>, vector<1x32xf32>,
    %c1 = arith.constant 1 : index
    %c0_12 = arith.constant 0 : index
    %14 = vector.load %arg24[%c1, %c0_12] : memref<18x32xf32, #tpu.memory_space<vmem>>, vector<8x32xf32>
    tpu.vector_store %arg24[%c1, %c0_12], %12 {strides = array<i32>} : memref<18x32xf32, #tpu.memory_space<vmem>>, vector<8x32xf32>,
    %c1_13 = arith.constant 1 : index
    %c0_14 = arith.constant 0 : index
    %c0_15 = arith.constant 0 : index
    %15 = vector.load %arg1[%c1_13, %c0_14, %c0_15] : memref<2x8x32xf32, #tpu.memory_space<vmem>>, vector<1x8x32xf32>
    %16 = vector.shape_cast %15 : vector<1x8x32xf32> to vector<8x32xf32>
    %17 = arith.mulf %16, %0 : vector<8x32xf32>
    %c31_i32_16 = arith.constant 31 : i32
    %18 = tpu.dynamic_rotate %16 by %c31_i32_16 dim 1 : vector<8x32xf32>, i32 -> vector<8x32xf32>
    %19 = arith.mulf %18, %1 : vector<8x32xf32>
    %20 = arith.addf %17, %19 : vector<8x32xf32>
    %c1_i32_17 = arith.constant 1 : i32
    %21 = tpu.dynamic_rotate %16 by %c1_i32_17 dim 1 : vector<8x32xf32>, i32 -> vector<8x32xf32>
    %22 = arith.mulf %21, %2 : vector<8x32xf32>
    %23 = arith.addf %20, %22 : vector<8x32xf32>
    %c9 = arith.constant 9 : index
    %c0_18 = arith.constant 0 : index
    %24 = vector.load %arg24[%c9, %c0_18] : memref<18x32xf32, #tpu.memory_space<vmem>>, vector<1x32xf32>
    tpu.vector_store %arg24[%c9, %c0_18], %3 {strides = array<i32>} : memref<18x32xf32, #tpu.memory_space<vmem>>, vector<1x32xf32>,
    %c10 = arith.constant 10 : index
    %c0_19 = arith.constant 0 : index
    %25 = vector.load %arg24[%c10, %c0_19] : memref<18x32xf32, #tpu.memory_space<vmem>>, vector<8x32xf32>
    tpu.vector_store %arg24[%c10, %c0_19], %23 {strides = array<i32>} : memref<18x32xf32, #tpu.memory_space<vmem>>, vector<8x32xf32>,
    %c0_20 = arith.constant 0 : index
    %c0_21 = arith.constant 0 : index
    %26 = vector.load %arg24[%c0_20, %c0_21] : memref<18x32xf32, #tpu.memory_space<vmem>>, vector<18x32xf32>
    %27 = arith.truncf %26 : vector<18x32xf32> to vector<18x32xbf16>
    %c0_22 = arith.constant 0 : index
    %c0_23 = arith.constant 0 : index
    %28 = vector.load %arg6[%c0_22, %c0_23] : memref<32x96xbf16, #tpu.memory_space<vmem>>, vector<32x96xbf16>
    %cst = arith.constant dense<0.000000e+00> : vector<18x96xf32>
    %29 = tpu.matmul %27, %28, %cst {dimension_numbers = #tpu.dot_dimension_numbers<[1], [0], [0], [1], [0, 0, 1, 1], [], []>} : vector<18x32xbf16>, vector<32x96xbf16>, vector<18x96xf32> -> vector<18x96xf32>
    %c0_24 = arith.constant 0 : index
    %c0_25 = arith.constant 0 : index
    %30 = vector.load %arg7[%c0_24, %c0_25] : memref<1x96xf32, #tpu.memory_space<vmem>>, vector<1x96xf32>
    %31 = vector.broadcast %30 : vector<1x96xf32> to vector<18x96xf32>
    %32 = arith.addf %29, %31 : vector<18x96xf32>
    %33 = vector.extract_strided_slice %32 {offsets = [0, 0], sizes = [9, 8], strides = [1, 1]} : vector<18x96xf32> to vector<9x8xf32>
    %34 = vector.extract_strided_slice %32 {offsets = [0, 32], sizes = [9, 8], strides = [1, 1]} : vector<18x96xf32> to vector<9x8xf32>
    %35 = vector.extract_strided_slice %32 {offsets = [0, 64], sizes = [9, 8], strides = [1, 1]} : vector<18x96xf32> to vector<9x8xf32>
    %36 = arith.truncf %33 : vector<9x8xf32> to vector<9x8xbf16>
    %37 = arith.truncf %34 : vector<9x8xf32> to vector<9x8xbf16>
    %cst_26 = arith.constant dense<0.000000e+00> : vector<9x9xf32>
    %38 = tpu.matmul %36, %37, %cst_26 {dimension_numbers = #tpu.dot_dimension_numbers<[1], [1], [0], [0], [0, 0, 1, 0], [], []>} : vector<9x8xbf16>, vector<9x8xbf16>, vector<9x9xf32> -> vector<9x9xf32>
    %cst_27 = arith.constant dense<0xFF800000> : vector<9xf32>
    %39 = vector.multi_reduction <maximumf>, %38, %cst_27 [1] : vector<9x9xf32> to vector<9xf32>
    %40 = vector.shape_cast %39 : vector<9xf32> to vector<9x1xf32>
    %41 = vector.broadcast %40 : vector<9x1xf32> to vector<9x9xf32>
    %42 = arith.subf %38, %41 : vector<9x9xf32>
    %43 = math.exp %42 : vector<9x9xf32>
    %cst_28 = arith.constant dense<0.000000e+00> : vector<9xf32>
    %44 = vector.multi_reduction <add>, %43, %cst_28 [1] : vector<9x9xf32> to vector<9xf32>
    %45 = vector.shape_cast %44 : vector<9xf32> to vector<9x1xf32>
    %46 = tpu.reciprocal %45 {approx = true} : vector<9x1xf32> -> vector<9x1xf32>
    %47 = vector.broadcast %46 : vector<9x1xf32> to vector<9x9xf32>
    %48 = arith.mulf %43, %47 : vector<9x9xf32>
    %49 = arith.truncf %48 : vector<9x9xf32> to vector<9x9xbf16>
    %50 = arith.truncf %35 : vector<9x8xf32> to vector<9x8xbf16>
    %cst_29 = arith.constant dense<0.000000e+00> : vector<9x8xf32>
    %51 = tpu.matmul %49, %50, %cst_29 {dimension_numbers = #tpu.dot_dimension_numbers<[1], [0], [0], [1], [0, 0, 1, 1], [], []>} : vector<9x9xbf16>, vector<9x8xbf16>, vector<9x8xf32> -> vector<9x8xf32>
    %c0_30 = arith.constant 0 : index
    %c0_31 = arith.constant 0 : index
    %52 = vector.load %arg25[%c0_30, %c0_31] : memref<18x32xf32, #tpu.memory_space<vmem>>, vector<9x8xf32>
    tpu.vector_store %arg25[%c0_30, %c0_31], %51 {strides = array<i32>} : memref<18x32xf32, #tpu.memory_space<vmem>>, vector<9x8xf32>,
    %53 = vector.extract_strided_slice %32 {offsets = [0, 8], sizes = [9, 8], strides = [1, 1]} : vector<18x96xf32> to vector<9x8xf32>
    %54 = vector.extract_strided_slice %32 {offsets = [0, 40], sizes = [9, 8], strides = [1, 1]} : vector<18x96xf32> to vector<9x8xf32>
    %55 = vector.extract_strided_slice %32 {offsets = [0, 72], sizes = [9, 8], strides = [1, 1]} : vector<18x96xf32> to vector<9x8xf32>
    %56 = arith.truncf %53 : vector<9x8xf32> to vector<9x8xbf16>
    %57 = arith.truncf %54 : vector<9x8xf32> to vector<9x8xbf16>
    %cst_32 = arith.constant dense<0.000000e+00> : vector<9x9xf32>
    %58 = tpu.matmul %56, %57, %cst_32 {dimension_numbers = #tpu.dot_dimension_numbers<[1], [1], [0], [0], [0, 0, 1, 0], [], []>} : vector<9x8xbf16>, vector<9x8xbf16>, vector<9x9xf32> -> vector<9x9xf32>
    %cst_33 = arith.constant dense<0xFF800000> : vector<9xf32>
    %59 = vector.multi_reduction <maximumf>, %58, %cst_33 [1] : vector<9x9xf32> to vector<9xf32>
    %60 = vector.shape_cast %59 : vector<9xf32> to vector<9x1xf32>
    %61 = vector.broadcast %60 : vector<9x1xf32> to vector<9x9xf32>
    %62 = arith.subf %58, %61 : vector<9x9xf32>
    %63 = math.exp %62 : vector<9x9xf32>
    %cst_34 = arith.constant dense<0.000000e+00> : vector<9xf32>
    %64 = vector.multi_reduction <add>, %63, %cst_34 [1] : vector<9x9xf32> to vector<9xf32>
    %65 = vector.shape_cast %64 : vector<9xf32> to vector<9x1xf32>
    %66 = tpu.reciprocal %65 {approx = true} : vector<9x1xf32> -> vector<9x1xf32>
    %67 = vector.broadcast %66 : vector<9x1xf32> to vector<9x9xf32>
    %68 = arith.mulf %63, %67 : vector<9x9xf32>
    %69 = arith.addf %48, %68 : vector<9x9xf32>
    %70 = arith.truncf %68 : vector<9x9xf32> to vector<9x9xbf16>
    %71 = arith.truncf %55 : vector<9x8xf32> to vector<9x8xbf16>
    %cst_35 = arith.constant dense<0.000000e+00> : vector<9x8xf32>
    %72 = tpu.matmul %70, %71, %cst_35 {dimension_numbers = #tpu.dot_dimension_numbers<[1], [0], [0], [1], [0, 0, 1, 1], [], []>} : vector<9x9xbf16>, vector<9x8xbf16>, vector<9x8xf32> -> vector<9x8xf32>
    %c0_36 = arith.constant 0 : index
    %c8 = arith.constant 8 : index
    %73 = vector.load %arg25[%c0_36, %c8] : memref<18x32xf32, #tpu.memory_space<vmem>>, vector<9x8xf32>
    tpu.vector_store %arg25[%c0_36, %c8], %72 {strides = array<i32>} : memref<18x32xf32, #tpu.memory_space<vmem>>, vector<9x8xf32>,
    %74 = vector.extract_strided_slice %32 {offsets = [0, 16], sizes = [9, 8], strides = [1, 1]} : vector<18x96xf32> to vector<9x8xf32>
    %75 = vector.extract_strided_slice %32 {offsets = [0, 48], sizes = [9, 8], strides = [1, 1]} : vector<18x96xf32> to vector<9x8xf32>
    %76 = vector.extract_strided_slice %32 {offsets = [0, 80], sizes = [9, 8], strides = [1, 1]} : vector<18x96xf32> to vector<9x8xf32>
    %77 = arith.truncf %74 : vector<9x8xf32> to vector<9x8xbf16>
    %78 = arith.truncf %75 : vector<9x8xf32> to vector<9x8xbf16>
    %cst_37 = arith.constant dense<0.000000e+00> : vector<9x9xf32>
    %79 = tpu.matmul %77, %78, %cst_37 {dimension_numbers = #tpu.dot_dimension_numbers<[1], [1], [0], [0], [0, 0, 1, 0], [], []>} : vector<9x8xbf16>, vector<9x8xbf16>, vector<9x9xf32> -> vector<9x9xf32>
    %cst_38 = arith.constant dense<0xFF800000> : vector<9xf32>
    %80 = vector.multi_reduction <maximumf>, %79, %cst_38 [1] : vector<9x9xf32> to vector<9xf32>
    %81 = vector.shape_cast %80 : vector<9xf32> to vector<9x1xf32>
    %82 = vector.broadcast %81 : vector<9x1xf32> to vector<9x9xf32>
    %83 = arith.subf %79, %82 : vector<9x9xf32>
    %84 = math.exp %83 : vector<9x9xf32>
    %cst_39 = arith.constant dense<0.000000e+00> : vector<9xf32>
    %85 = vector.multi_reduction <add>, %84, %cst_39 [1] : vector<9x9xf32> to vector<9xf32>
    %86 = vector.shape_cast %85 : vector<9xf32> to vector<9x1xf32>
    %87 = tpu.reciprocal %86 {approx = true} : vector<9x1xf32> -> vector<9x1xf32>
    %88 = vector.broadcast %87 : vector<9x1xf32> to vector<9x9xf32>
    %89 = arith.mulf %84, %88 : vector<9x9xf32>
    %90 = arith.addf %69, %89 : vector<9x9xf32>
    %91 = arith.truncf %89 : vector<9x9xf32> to vector<9x9xbf16>
    %92 = arith.truncf %76 : vector<9x8xf32> to vector<9x8xbf16>
    %cst_40 = arith.constant dense<0.000000e+00> : vector<9x8xf32>
    %93 = tpu.matmul %91, %92, %cst_40 {dimension_numbers = #tpu.dot_dimension_numbers<[1], [0], [0], [1], [0, 0, 1, 1], [], []>} : vector<9x9xbf16>, vector<9x8xbf16>, vector<9x8xf32> -> vector<9x8xf32>
    %c0_41 = arith.constant 0 : index
    %c16 = arith.constant 16 : index
    %94 = vector.load %arg25[%c0_41, %c16] : memref<18x32xf32, #tpu.memory_space<vmem>>, vector<9x8xf32>
    tpu.vector_store %arg25[%c0_41, %c16], %93 {strides = array<i32>} : memref<18x32xf32, #tpu.memory_space<vmem>>, vector<9x8xf32>,
    %95 = vector.extract_strided_slice %32 {offsets = [0, 24], sizes = [9, 8], strides = [1, 1]} : vector<18x96xf32> to vector<9x8xf32>
    %96 = vector.extract_strided_slice %32 {offsets = [0, 56], sizes = [9, 8], strides = [1, 1]} : vector<18x96xf32> to vector<9x8xf32>
    %97 = vector.extract_strided_slice %32 {offsets = [0, 88], sizes = [9, 8], strides = [1, 1]} : vector<18x96xf32> to vector<9x8xf32>
    %98 = arith.truncf %95 : vector<9x8xf32> to vector<9x8xbf16>
    %99 = arith.truncf %96 : vector<9x8xf32> to vector<9x8xbf16>
    %cst_42 = arith.constant dense<0.000000e+00> : vector<9x9xf32>
    %100 = tpu.matmul %98, %99, %cst_42 {dimension_numbers = #tpu.dot_dimension_numbers<[1], [1], [0], [0], [0, 0, 1, 0], [], []>} : vector<9x8xbf16>, vector<9x8xbf16>, vector<9x9xf32> -> vector<9x9xf32>
    %cst_43 = arith.constant dense<0xFF800000> : vector<9xf32>
    %101 = vector.multi_reduction <maximumf>, %100, %cst_43 [1] : vector<9x9xf32> to vector<9xf32>
    %102 = vector.shape_cast %101 : vector<9xf32> to vector<9x1xf32>
    %103 = vector.broadcast %102 : vector<9x1xf32> to vector<9x9xf32>
    %104 = arith.subf %100, %103 : vector<9x9xf32>
    %105 = math.exp %104 : vector<9x9xf32>
    %cst_44 = arith.constant dense<0.000000e+00> : vector<9xf32>
    %106 = vector.multi_reduction <add>, %105, %cst_44 [1] : vector<9x9xf32> to vector<9xf32>
    %107 = vector.shape_cast %106 : vector<9xf32> to vector<9x1xf32>
    %108 = tpu.reciprocal %107 {approx = true} : vector<9x1xf32> -> vector<9x1xf32>
    %109 = vector.broadcast %108 : vector<9x1xf32> to vector<9x9xf32>
    %110 = arith.mulf %105, %109 : vector<9x9xf32>
    %111 = arith.addf %90, %110 : vector<9x9xf32>
    %112 = arith.truncf %110 : vector<9x9xf32> to vector<9x9xbf16>
    %113 = arith.truncf %97 : vector<9x8xf32> to vector<9x8xbf16>
    %cst_45 = arith.constant dense<0.000000e+00> : vector<9x8xf32>
    %114 = tpu.matmul %112, %113, %cst_45 {dimension_numbers = #tpu.dot_dimension_numbers<[1], [0], [0], [1], [0, 0, 1, 1], [], []>} : vector<9x9xbf16>, vector<9x8xbf16>, vector<9x8xf32> -> vector<9x8xf32>
    %c0_46 = arith.constant 0 : index
    %c24 = arith.constant 24 : index
    %115 = vector.load %arg25[%c0_46, %c24] : memref<18x32xf32, #tpu.memory_space<vmem>>, vector<9x8xf32>
    tpu.vector_store %arg25[%c0_46, %c24], %114 {strides = array<i32>} : memref<18x32xf32, #tpu.memory_space<vmem>>, vector<9x8xf32>,
    %cst_47 = arith.constant 2.500000e-01 : f32
    %116 = vector.broadcast %cst_47 : f32 to vector<9x9xf32>
    %117 = arith.mulf %111, %116 : vector<9x9xf32>
    %c0_48 = arith.constant 0 : index
    %c0_49 = arith.constant 0 : index
    %c0_50 = arith.constant 0 : index
    %c0_51 = arith.constant 0 : index
    %118 = vector.load %arg23[%c0_48, %c0_49, %c0_50, %c0_51] : memref<1x2x9x9xf32, #tpu.memory_space<vmem>>, vector<1x1x9x9xf32>
    %119 = vector.shape_cast %118 : vector<1x1x9x9xf32> to vector<9x9xf32>
    %120 = vector.shape_cast %117 : vector<9x9xf32> to vector<1x1x9x9xf32>
    tpu.vector_store %arg23[%c0_48, %c0_49, %c0_50, %c0_51], %120 {strides = array<i32>} : memref<1x2x9x9xf32, #tpu.memory_space<vmem>>, vector<1x1x9x9xf32>,
    %121 = vector.extract_strided_slice %32 {offsets = [9, 0], sizes = [9, 8], strides = [1, 1]} : vector<18x96xf32> to vector<9x8xf32>
    %122 = vector.extract_strided_slice %32 {offsets = [9, 32], sizes = [9, 8], strides = [1, 1]} : vector<18x96xf32> to vector<9x8xf32>
    %123 = vector.extract_strided_slice %32 {offsets = [9, 64], sizes = [9, 8], strides = [1, 1]} : vector<18x96xf32> to vector<9x8xf32>
    %124 = arith.truncf %121 : vector<9x8xf32> to vector<9x8xbf16>
    %125 = arith.truncf %122 : vector<9x8xf32> to vector<9x8xbf16>
    %cst_52 = arith.constant dense<0.000000e+00> : vector<9x9xf32>
    %126 = tpu.matmul %124, %125, %cst_52 {dimension_numbers = #tpu.dot_dimension_numbers<[1], [1], [0], [0], [0, 0, 1, 0], [], []>} : vector<9x8xbf16>, vector<9x8xbf16>, vector<9x9xf32> -> vector<9x9xf32>
    %cst_53 = arith.constant dense<0xFF800000> : vector<9xf32>
    %127 = vector.multi_reduction <maximumf>, %126, %cst_53 [1] : vector<9x9xf32> to vector<9xf32>
    %128 = vector.shape_cast %127 : vector<9xf32> to vector<9x1xf32>
    %129 = vector.broadcast %128 : vector<9x1xf32> to vector<9x9xf32>
    %130 = arith.subf %126, %129 : vector<9x9xf32>
    %131 = math.exp %130 : vector<9x9xf32>
    %cst_54 = arith.constant dense<0.000000e+00> : vector<9xf32>
    %132 = vector.multi_reduction <add>, %131, %cst_54 [1] : vector<9x9xf32> to vector<9xf32>
    %133 = vector.shape_cast %132 : vector<9xf32> to vector<9x1xf32>
    %134 = tpu.reciprocal %133 {approx = true} : vector<9x1xf32> -> vector<9x1xf32>
    %135 = vector.broadcast %134 : vector<9x1xf32> to vector<9x9xf32>
    %136 = arith.mulf %131, %135 : vector<9x9xf32>
    %137 = arith.truncf %136 : vector<9x9xf32> to vector<9x9xbf16>
    %138 = arith.truncf %123 : vector<9x8xf32> to vector<9x8xbf16>
    %cst_55 = arith.constant dense<0.000000e+00> : vector<9x8xf32>
    %139 = tpu.matmul %137, %138, %cst_55 {dimension_numbers = #tpu.dot_dimension_numbers<[1], [0], [0], [1], [0, 0, 1, 1], [], []>} : vector<9x9xbf16>, vector<9x8xbf16>, vector<9x8xf32> -> vector<9x8xf32>
    %c9_56 = arith.constant 9 : index
    %c0_57 = arith.constant 0 : index
    %140 = vector.load %arg25[%c9_56, %c0_57] : memref<18x32xf32, #tpu.memory_space<vmem>>, vector<9x8xf32>
    tpu.vector_store %arg25[%c9_56, %c0_57], %139 {strides = array<i32>} : memref<18x32xf32, #tpu.memory_space<vmem>>, vector<9x8xf32>,
    %141 = vector.extract_strided_slice %32 {offsets = [9, 8], sizes = [9, 8], strides = [1, 1]} : vector<18x96xf32> to vector<9x8xf32>
    %142 = vector.extract_strided_slice %32 {offsets = [9, 40], sizes = [9, 8], strides = [1, 1]} : vector<18x96xf32> to vector<9x8xf32>
    %143 = vector.extract_strided_slice %32 {offsets = [9, 72], sizes = [9, 8], strides = [1, 1]} : vector<18x96xf32> to vector<9x8xf32>
    %144 = arith.truncf %141 : vector<9x8xf32> to vector<9x8xbf16>
    %145 = arith.truncf %142 : vector<9x8xf32> to vector<9x8xbf16>
    %cst_58 = arith.constant dense<0.000000e+00> : vector<9x9xf32>
    %146 = tpu.matmul %144, %145, %cst_58 {dimension_numbers = #tpu.dot_dimension_numbers<[1], [1], [0], [0], [0, 0, 1, 0], [], []>} : vector<9x8xbf16>, vector<9x8xbf16>, vector<9x9xf32> -> vector<9x9xf32>
    %cst_59 = arith.constant dense<0xFF800000> : vector<9xf32>
    %147 = vector.multi_reduction <maximumf>, %146, %cst_59 [1] : vector<9x9xf32> to vector<9xf32>
    %148 = vector.shape_cast %147 : vector<9xf32> to vector<9x1xf32>
    %149 = vector.broadcast %148 : vector<9x1xf32> to vector<9x9xf32>
    %150 = arith.subf %146, %149 : vector<9x9xf32>
    %151 = math.exp %150 : vector<9x9xf32>
    %cst_60 = arith.constant dense<0.000000e+00> : vector<9xf32>
    %152 = vector.multi_reduction <add>, %151, %cst_60 [1] : vector<9x9xf32> to vector<9xf32>
    %153 = vector.shape_cast %152 : vector<9xf32> to vector<9x1xf32>
    %154 = tpu.reciprocal %153 {approx = true} : vector<9x1xf32> -> vector<9x1xf32>
    %155 = vector.broadcast %154 : vector<9x1xf32> to vector<9x9xf32>
    %156 = arith.mulf %151, %155 : vector<9x9xf32>
    %157 = arith.addf %136, %156 : vector<9x9xf32>
    %158 = arith.truncf %156 : vector<9x9xf32> to vector<9x9xbf16>
    %159 = arith.truncf %143 : vector<9x8xf32> to vector<9x8xbf16>
    %cst_61 = arith.constant dense<0.000000e+00> : vector<9x8xf32>
    %160 = tpu.matmul %158, %159, %cst_61 {dimension_numbers = #tpu.dot_dimension_numbers<[1], [0], [0], [1], [0, 0, 1, 1], [], []>} : vector<9x9xbf16>, vector<9x8xbf16>, vector<9x8xf32> -> vector<9x8xf32>
    %c9_62 = arith.constant 9 : index
    %c8_63 = arith.constant 8 : index
    %161 = vector.load %arg25[%c9_62, %c8_63] : memref<18x32xf32, #tpu.memory_space<vmem>>, vector<9x8xf32>
    tpu.vector_store %arg25[%c9_62, %c8_63], %160 {strides = array<i32>} : memref<18x32xf32, #tpu.memory_space<vmem>>, vector<9x8xf32>,
    %162 = vector.extract_strided_slice %32 {offsets = [9, 16], sizes = [9, 8], strides = [1, 1]} : vector<18x96xf32> to vector<9x8xf32>
    %163 = vector.extract_strided_slice %32 {offsets = [9, 48], sizes = [9, 8], strides = [1, 1]} : vector<18x96xf32> to vector<9x8xf32>
    %164 = vector.extract_strided_slice %32 {offsets = [9, 80], sizes = [9, 8], strides = [1, 1]} : vector<18x96xf32> to vector<9x8xf32>
    %165 = arith.truncf %162 : vector<9x8xf32> to vector<9x8xbf16>
    %166 = arith.truncf %163 : vector<9x8xf32> to vector<9x8xbf16>
    %cst_64 = arith.constant dense<0.000000e+00> : vector<9x9xf32>
    %167 = tpu.matmul %165, %166, %cst_64 {dimension_numbers = #tpu.dot_dimension_numbers<[1], [1], [0], [0], [0, 0, 1, 0], [], []>} : vector<9x8xbf16>, vector<9x8xbf16>, vector<9x9xf32> -> vector<9x9xf32>
    %cst_65 = arith.constant dense<0xFF800000> : vector<9xf32>
    %168 = vector.multi_reduction <maximumf>, %167, %cst_65 [1] : vector<9x9xf32> to vector<9xf32>
    %169 = vector.shape_cast %168 : vector<9xf32> to vector<9x1xf32>
    %170 = vector.broadcast %169 : vector<9x1xf32> to vector<9x9xf32>
    %171 = arith.subf %167, %170 : vector<9x9xf32>
    %172 = math.exp %171 : vector<9x9xf32>
    %cst_66 = arith.constant dense<0.000000e+00> : vector<9xf32>
    %173 = vector.multi_reduction <add>, %172, %cst_66 [1] : vector<9x9xf32> to vector<9xf32>
    %174 = vector.shape_cast %173 : vector<9xf32> to vector<9x1xf32>
    %175 = tpu.reciprocal %174 {approx = true} : vector<9x1xf32> -> vector<9x1xf32>
    %176 = vector.broadcast %175 : vector<9x1xf32> to vector<9x9xf32>
    %177 = arith.mulf %172, %176 : vector<9x9xf32>
    %178 = arith.addf %157, %177 : vector<9x9xf32>
    %179 = arith.truncf %177 : vector<9x9xf32> to vector<9x9xbf16>
    %180 = arith.truncf %164 : vector<9x8xf32> to vector<9x8xbf16>
    %cst_67 = arith.constant dense<0.000000e+00> : vector<9x8xf32>
    %181 = tpu.matmul %179, %180, %cst_67 {dimension_numbers = #tpu.dot_dimension_numbers<[1], [0], [0], [1], [0, 0, 1, 1], [], []>} : vector<9x9xbf16>, vector<9x8xbf16>, vector<9x8xf32> -> vector<9x8xf32>
    %c9_68 = arith.constant 9 : index
    %c16_69 = arith.constant 16 : index
    %182 = vector.load %arg25[%c9_68, %c16_69] : memref<18x32xf32, #tpu.memory_space<vmem>>, vector<9x8xf32>
    tpu.vector_store %arg25[%c9_68, %c16_69], %181 {strides = array<i32>} : memref<18x32xf32, #tpu.memory_space<vmem>>, vector<9x8xf32>,
    %183 = vector.extract_strided_slice %32 {offsets = [9, 24], sizes = [9, 8], strides = [1, 1]} : vector<18x96xf32> to vector<9x8xf32>
    %184 = vector.extract_strided_slice %32 {offsets = [9, 56], sizes = [9, 8], strides = [1, 1]} : vector<18x96xf32> to vector<9x8xf32>
    %185 = vector.extract_strided_slice %32 {offsets = [9, 88], sizes = [9, 8], strides = [1, 1]} : vector<18x96xf32> to vector<9x8xf32>
    %186 = arith.truncf %183 : vector<9x8xf32> to vector<9x8xbf16>
    %187 = arith.truncf %184 : vector<9x8xf32> to vector<9x8xbf16>
    %cst_70 = arith.constant dense<0.000000e+00> : vector<9x9xf32>
    %188 = tpu.matmul %186, %187, %cst_70 {dimension_numbers = #tpu.dot_dimension_numbers<[1], [1], [0], [0], [0, 0, 1, 0], [], []>} : vector<9x8xbf16>, vector<9x8xbf16>, vector<9x9xf32> -> vector<9x9xf32>
    %cst_71 = arith.constant dense<0xFF800000> : vector<9xf32>
    %189 = vector.multi_reduction <maximumf>, %188, %cst_71 [1] : vector<9x9xf32> to vector<9xf32>
    %190 = vector.shape_cast %189 : vector<9xf32> to vector<9x1xf32>
    %191 = vector.broadcast %190 : vector<9x1xf32> to vector<9x9xf32>
    %192 = arith.subf %188, %191 : vector<9x9xf32>
    %193 = math.exp %192 : vector<9x9xf32>
    %cst_72 = arith.constant dense<0.000000e+00> : vector<9xf32>
    %194 = vector.multi_reduction <add>, %193, %cst_72 [1] : vector<9x9xf32> to vector<9xf32>
    %195 = vector.shape_cast %194 : vector<9xf32> to vector<9x1xf32>
    %196 = tpu.reciprocal %195 {approx = true} : vector<9x1xf32> -> vector<9x1xf32>
    %197 = vector.broadcast %196 : vector<9x1xf32> to vector<9x9xf32>
    %198 = arith.mulf %193, %197 : vector<9x9xf32>
    %199 = arith.addf %178, %198 : vector<9x9xf32>
    %200 = arith.truncf %198 : vector<9x9xf32> to vector<9x9xbf16>
    %201 = arith.truncf %185 : vector<9x8xf32> to vector<9x8xbf16>
    %cst_73 = arith.constant dense<0.000000e+00> : vector<9x8xf32>
    %202 = tpu.matmul %200, %201, %cst_73 {dimension_numbers = #tpu.dot_dimension_numbers<[1], [0], [0], [1], [0, 0, 1, 1], [], []>} : vector<9x9xbf16>, vector<9x8xbf16>, vector<9x8xf32> -> vector<9x8xf32>
    %c9_74 = arith.constant 9 : index
    %c24_75 = arith.constant 24 : index
    %203 = vector.load %arg25[%c9_74, %c24_75] : memref<18x32xf32, #tpu.memory_space<vmem>>, vector<9x8xf32>
    tpu.vector_store %arg25[%c9_74, %c24_75], %202 {strides = array<i32>} : memref<18x32xf32, #tpu.memory_space<vmem>>, vector<9x8xf32>,
    %cst_76 = arith.constant 2.500000e-01 : f32
    %204 = vector.broadcast %cst_76 : f32 to vector<9x9xf32>
    %205 = arith.mulf %199, %204 : vector<9x9xf32>
    %c0_77 = arith.constant 0 : index
    %c1_78 = arith.constant 1 : index
    %c0_79 = arith.constant 0 : index
    %c0_80 = arith.constant 0 : index
    %206 = vector.load %arg23[%c0_77, %c1_78, %c0_79, %c0_80] : memref<1x2x9x9xf32, #tpu.memory_space<vmem>>, vector<1x1x9x9xf32>
    %207 = vector.shape_cast %206 : vector<1x1x9x9xf32> to vector<9x9xf32>
    %208 = vector.shape_cast %205 : vector<9x9xf32> to vector<1x1x9x9xf32>
    tpu.vector_store %arg23[%c0_77, %c1_78, %c0_79, %c0_80], %208 {strides = array<i32>} : memref<1x2x9x9xf32, #tpu.memory_space<vmem>>, vector<1x1x9x9xf32>,
    %c0_81 = arith.constant 0 : index
    %c0_82 = arith.constant 0 : index
    %209 = vector.load %arg25[%c0_81, %c0_82] : memref<18x32xf32, #tpu.memory_space<vmem>>, vector<18x32xf32>
    %210 = arith.truncf %209 : vector<18x32xf32> to vector<18x32xbf16>
    %c0_83 = arith.constant 0 : index
    %c0_84 = arith.constant 0 : index
    %211 = vector.load %arg8[%c0_83, %c0_84] : memref<32x32xbf16, #tpu.memory_space<vmem>>, vector<32x32xbf16>
    %cst_85 = arith.constant dense<0.000000e+00> : vector<18x32xf32>
    %212 = tpu.matmul %210, %211, %cst_85 {dimension_numbers = #tpu.dot_dimension_numbers<[1], [0], [0], [1], [0, 0, 1, 1], [], []>} : vector<18x32xbf16>, vector<32x32xbf16>, vector<18x32xf32> -> vector<18x32xf32>
    %c0_86 = arith.constant 0 : index
    %c0_87 = arith.constant 0 : index
    %213 = vector.load %arg9[%c0_86, %c0_87] : memref<1x32xf32, #tpu.memory_space<vmem>>, vector<1x32xf32>
    %214 = vector.broadcast %213 : vector<1x32xf32> to vector<18x32xf32>
    %215 = arith.addf %212, %214 : vector<18x32xf32>
    %216 = arith.addf %26, %215 : vector<18x32xf32>
    %c0_88 = arith.constant 0 : index
    %c0_89 = arith.constant 0 : index
    %217 = vector.load %arg10[%c0_88, %c0_89] : memref<1x32xf32, #tpu.memory_space<vmem>>, vector<1x32xf32>
    %c0_90 = arith.constant 0 : index
    %c0_91 = arith.constant 0 : index
    %218 = vector.load %arg11[%c0_90, %c0_91] : memref<1x32xf32, #tpu.memory_space<vmem>>, vector<1x32xf32>
    %cst_92 = arith.constant dense<0.000000e+00> : vector<18xf32>
    %219 = vector.multi_reduction <add>, %216, %cst_92 [1] : vector<18x32xf32> to vector<18xf32>
    %220 = vector.shape_cast %219 : vector<18xf32> to vector<18x1xf32>
    %cst_93 = arith.constant 3.200000e+01 : f32
    %221 = vector.broadcast %cst_93 : f32 to vector<18x1xf32>
    %222 = arith.divf %220, %221 : vector<18x1xf32>
    %223 = vector.broadcast %222 : vector<18x1xf32> to vector<18x32xf32>
    %224 = arith.subf %216, %223 : vector<18x32xf32>
    %225 = arith.mulf %224, %224 : vector<18x32xf32>
    %cst_94 = arith.constant dense<0.000000e+00> : vector<18xf32>
    %226 = vector.multi_reduction <add>, %225, %cst_94 [1] : vector<18x32xf32> to vector<18xf32>
    %227 = vector.shape_cast %226 : vector<18xf32> to vector<18x1xf32>
    %cst_95 = arith.constant 3.200000e+01 : f32
    %228 = vector.broadcast %cst_95 : f32 to vector<18x1xf32>
    %229 = arith.divf %227, %228 : vector<18x1xf32>
    %230 = vector.broadcast %222 : vector<18x1xf32> to vector<18x32xf32>
    %231 = arith.subf %216, %230 : vector<18x32xf32>
    %cst_96 = arith.constant 9.99999974E-6 : f32
    %232 = vector.broadcast %cst_96 : f32 to vector<18x1xf32>
    %233 = arith.addf %229, %232 : vector<18x1xf32>
    %234 = math.rsqrt %233 : vector<18x1xf32>
    %235 = vector.broadcast %234 : vector<18x1xf32> to vector<18x32xf32>
    %236 = arith.mulf %231, %235 : vector<18x32xf32>
    %237 = vector.broadcast %217 : vector<1x32xf32> to vector<18x32xf32>
    %238 = arith.mulf %236, %237 : vector<18x32xf32>
    %239 = vector.broadcast %218 : vector<1x32xf32> to vector<18x32xf32>
    %240 = arith.addf %238, %239 : vector<18x32xf32>
    %241 = arith.truncf %240 : vector<18x32xf32> to vector<18x32xbf16>
    %c0_97 = arith.constant 0 : index
    %c0_98 = arith.constant 0 : index
    %242 = vector.load %arg12[%c0_97, %c0_98] : memref<32x128xbf16, #tpu.memory_space<vmem>>, vector<32x128xbf16>
    %cst_99 = arith.constant dense<0.000000e+00> : vector<18x128xf32>
    %243 = tpu.matmul %241, %242, %cst_99 {dimension_numbers = #tpu.dot_dimension_numbers<[1], [0], [0], [1], [0, 0, 1, 1], [], []>} : vector<18x32xbf16>, vector<32x128xbf16>, vector<18x128xf32> -> vector<18x128xf32>
    %c0_100 = arith.constant 0 : index
    %c0_101 = arith.constant 0 : index
    %244 = vector.load %arg13[%c0_100, %c0_101] : memref<1x128xf32, #tpu.memory_space<vmem>>, vector<1x128xf32>
    %245 = vector.broadcast %244 : vector<1x128xf32> to vector<18x128xf32>
    %246 = arith.addf %243, %245 : vector<18x128xf32>
    %247 = arith.mulf %246, %246 : vector<18x128xf32>
    %248 = arith.mulf %246, %247 : vector<18x128xf32>
    %cst_102 = arith.constant 4.471500e-02 : f32
    %249 = vector.broadcast %cst_102 : f32 to vector<18x128xf32>
    %250 = arith.mulf %249, %248 : vector<18x128xf32>
    %251 = arith.addf %246, %250 : vector<18x128xf32>
    %cst_103 = arith.constant 0.797884583 : f32
    %252 = vector.broadcast %cst_103 : f32 to vector<18x128xf32>
    %253 = arith.mulf %252, %251 : vector<18x128xf32>
    %254 = math.tanh %253 : vector<18x128xf32>
    %cst_104 = arith.constant 1.000000e+00 : f32
    %255 = vector.broadcast %cst_104 : f32 to vector<18x128xf32>
    %256 = arith.addf %255, %254 : vector<18x128xf32>
    %cst_105 = arith.constant 5.000000e-01 : f32
    %257 = vector.broadcast %cst_105 : f32 to vector<18x128xf32>
    %258 = arith.mulf %257, %256 : vector<18x128xf32>
    %259 = arith.mulf %246, %258 : vector<18x128xf32>
    %260 = arith.truncf %259 : vector<18x128xf32> to vector<18x128xbf16>
    %c0_106 = arith.constant 0 : index
    %c0_107 = arith.constant 0 : index
    %261 = vector.load %arg14[%c0_106, %c0_107] : memref<128x32xbf16, #tpu.memory_space<vmem>>, vector<128x32xbf16>
    %cst_108 = arith.constant dense<0.000000e+00> : vector<18x32xf32>
    %262 = tpu.matmul %260, %261, %cst_108 {dimension_numbers = #tpu.dot_dimension_numbers<[1], [0], [0], [1], [0, 0, 1, 1], [], []>} : vector<18x128xbf16>, vector<128x32xbf16>, vector<18x32xf32> -> vector<18x32xf32>
    %c0_109 = arith.constant 0 : index
    %c0_110 = arith.constant 0 : index
    %263 = vector.load %arg15[%c0_109, %c0_110] : memref<1x32xf32, #tpu.memory_space<vmem>>, vector<1x32xf32>
    %264 = vector.broadcast %263 : vector<1x32xf32> to vector<18x32xf32>
    %265 = arith.addf %262, %264 : vector<18x32xf32>
    %266 = arith.addf %240, %265 : vector<18x32xf32>
    %c0_111 = arith.constant 0 : index
    %c0_112 = arith.constant 0 : index
    %267 = vector.load %arg16[%c0_111, %c0_112] : memref<1x32xf32, #tpu.memory_space<vmem>>, vector<1x32xf32>
    %c0_113 = arith.constant 0 : index
    %c0_114 = arith.constant 0 : index
    %268 = vector.load %arg17[%c0_113, %c0_114] : memref<1x32xf32, #tpu.memory_space<vmem>>, vector<1x32xf32>
    %cst_115 = arith.constant dense<0.000000e+00> : vector<18xf32>
    %269 = vector.multi_reduction <add>, %266, %cst_115 [1] : vector<18x32xf32> to vector<18xf32>
    %270 = vector.shape_cast %269 : vector<18xf32> to vector<18x1xf32>
    %cst_116 = arith.constant 3.200000e+01 : f32
    %271 = vector.broadcast %cst_116 : f32 to vector<18x1xf32>
    %272 = arith.divf %270, %271 : vector<18x1xf32>
    %273 = vector.broadcast %272 : vector<18x1xf32> to vector<18x32xf32>
    %274 = arith.subf %266, %273 : vector<18x32xf32>
    %275 = arith.mulf %274, %274 : vector<18x32xf32>
    %cst_117 = arith.constant dense<0.000000e+00> : vector<18xf32>
    %276 = vector.multi_reduction <add>, %275, %cst_117 [1] : vector<18x32xf32> to vector<18xf32>
    %277 = vector.shape_cast %276 : vector<18xf32> to vector<18x1xf32>
    %cst_118 = arith.constant 3.200000e+01 : f32
    %278 = vector.broadcast %cst_118 : f32 to vector<18x1xf32>
    %279 = arith.divf %277, %278 : vector<18x1xf32>
    %280 = vector.broadcast %272 : vector<18x1xf32> to vector<18x32xf32>
    %281 = arith.subf %266, %280 : vector<18x32xf32>
    %cst_119 = arith.constant 9.99999974E-6 : f32
    %282 = vector.broadcast %cst_119 : f32 to vector<18x1xf32>
    %283 = arith.addf %279, %282 : vector<18x1xf32>
    %284 = math.rsqrt %283 : vector<18x1xf32>
    %285 = vector.broadcast %284 : vector<18x1xf32> to vector<18x32xf32>
    %286 = arith.mulf %281, %285 : vector<18x32xf32>
    %287 = vector.broadcast %267 : vector<1x32xf32> to vector<18x32xf32>
    %288 = arith.mulf %286, %287 : vector<18x32xf32>
    %289 = vector.broadcast %268 : vector<1x32xf32> to vector<18x32xf32>
    %290 = arith.addf %288, %289 : vector<18x32xf32>
    %291 = vector.extract_strided_slice %290 {offsets = [0, 0], sizes = [1, 32], strides = [1, 1]} : vector<18x32xf32> to vector<1x32xf32>
    %c0_120 = arith.constant 0 : index
    %c0_121 = arith.constant 0 : index
    %292 = vector.load %arg26[%c0_120, %c0_121] : memref<2x32xf32, #tpu.memory_space<vmem>>, vector<1x32xf32>
    tpu.vector_store %arg26[%c0_120, %c0_121], %291 {strides = array<i32>} : memref<2x32xf32, #tpu.memory_space<vmem>>, vector<1x32xf32>,
    %293 = vector.extract_strided_slice %290 {offsets = [9, 0], sizes = [1, 32], strides = [1, 1]} : vector<18x32xf32> to vector<1x32xf32>
    %c1_122 = arith.constant 1 : index
    %c0_123 = arith.constant 0 : index
    %294 = vector.load %arg26[%c1_122, %c0_123] : memref<2x32xf32, #tpu.memory_space<vmem>>, vector<1x32xf32>
    tpu.vector_store %arg26[%c1_122, %c0_123], %293 {strides = array<i32>} : memref<2x32xf32, #tpu.memory_space<vmem>>, vector<1x32xf32>,
    %c0_124 = arith.constant 0 : index
    %c0_125 = arith.constant 0 : index
    %295 = vector.load %arg26[%c0_124, %c0_125] : memref<2x32xf32, #tpu.memory_space<vmem>>, vector<2x32xf32>
    %296 = arith.truncf %295 : vector<2x32xf32> to vector<2x32xbf16>
    %c0_126 = arith.constant 0 : index
    %c0_127 = arith.constant 0 : index
    %297 = vector.load %arg18[%c0_126, %c0_127] : memref<32x32xbf16, #tpu.memory_space<vmem>>, vector<32x32xbf16>
    %cst_128 = arith.constant dense<0.000000e+00> : vector<2x32xf32>
    %298 = tpu.matmul %296, %297, %cst_128 {dimension_numbers = #tpu.dot_dimension_numbers<[1], [0], [0], [1], [0, 0, 1, 1], [], []>} : vector<2x32xbf16>, vector<32x32xbf16>, vector<2x32xf32> -> vector<2x32xf32>
    %c0_129 = arith.constant 0 : index
    %c0_130 = arith.constant 0 : index
    %299 = vector.load %arg19[%c0_129, %c0_130] : memref<1x32xf32, #tpu.memory_space<vmem>>, vector<1x32xf32>
    %300 = vector.broadcast %299 : vector<1x32xf32> to vector<2x32xf32>
    %301 = arith.addf %298, %300 : vector<2x32xf32>
    %302 = arith.negf %301 : vector<2x32xf32>
    %303 = math.exp %302 : vector<2x32xf32>
    %cst_131 = arith.constant 1.000000e+00 : f32
    %304 = vector.broadcast %cst_131 : f32 to vector<2x32xf32>
    %305 = arith.addf %304, %303 : vector<2x32xf32>
    %306 = arith.divf %304, %305 : vector<2x32xf32>
    %307 = arith.mulf %301, %306 : vector<2x32xf32>
    %308 = arith.truncf %307 : vector<2x32xf32> to vector<2x32xbf16>
    %c0_132 = arith.constant 0 : index
    %c0_133 = arith.constant 0 : index
    %309 = vector.load %arg20[%c0_132, %c0_133] : memref<32x128xbf16, #tpu.memory_space<vmem>>, vector<32x128xbf16>
    %cst_134 = arith.constant dense<0.000000e+00> : vector<2x128xf32>
    %310 = tpu.matmul %308, %309, %cst_134 {dimension_numbers = #tpu.dot_dimension_numbers<[1], [0], [0], [1], [0, 0, 1, 1], [], []>} : vector<2x32xbf16>, vector<32x128xbf16>, vector<2x128xf32> -> vector<2x128xf32>
    %c0_135 = arith.constant 0 : index
    %c0_136 = arith.constant 0 : index
    %311 = vector.load %arg21[%c0_135, %c0_136] : memref<1x128xf32, #tpu.memory_space<vmem>>, vector<1x128xf32>
    %312 = vector.broadcast %311 : vector<1x128xf32> to vector<2x128xf32>
    %313 = arith.addf %310, %312 : vector<2x128xf32>
    %c0_137 = arith.constant 0 : index
    %c0_138 = arith.constant 0 : index
    %c0_139 = arith.constant 0 : index
    %314 = vector.load %arg22[%c0_137, %c0_138, %c0_139] : memref<1x2x128xf32, #tpu.memory_space<vmem>>, vector<1x2x128xf32>
    %315 = vector.shape_cast %314 : vector<1x2x128xf32> to vector<2x128xf32>
    %316 = vector.shape_cast %313 : vector<2x128xf32> to vector<1x2x128xf32>
    tpu.vector_store %arg22[%c0_137, %c0_138, %c0_139], %316 {strides = array<i32>} : memref<1x2x128xf32, #tpu.memory_space<vmem>>, vector<1x2x128xf32>,
    return
  }
  func.func @transform_0(%arg0: i32) -> (i32, i32, i32) {
    %c0_i32 = arith.constant 0 : i32
    %c0_i32_0 = arith.constant 0 : i32
    %c0_i32_1 = arith.constant 0 : i32
    return %arg0, %c0_i32, %c0_i32_0 : i32, i32, i32
  }
  func.func @transform_1(%arg0: i32) -> (i32, i32) {
    %c0_i32 = arith.constant 0 : i32
    %c0_i32_0 = arith.constant 0 : i32
    %c0_i32_1 = arith.constant 0 : i32
    return %c0_i32, %c0_i32_0 : i32, i32
  }
  func.func @transform_2(%arg0: i32) -> (i32, i32) {
    %c0_i32 = arith.constant 0 : i32
    %c0_i32_0 = arith.constant 0 : i32
    %c0_i32_1 = arith.constant 0 : i32
    return %c0_i32, %c0_i32_0 : i32, i32
  }
  func.func @transform_3(%arg0: i32) -> (i32, i32) {
    %c0_i32 = arith.constant 0 : i32
    %c0_i32_0 = arith.constant 0 : i32
    %c0_i32_1 = arith.constant 0 : i32
    return %c0_i32, %c0_i32_0 : i32, i32
  }
  func.func @transform_4(%arg0: i32) -> (i32, i32) {
    %c0_i32 = arith.constant 0 : i32
    %c0_i32_0 = arith.constant 0 : i32
    %c0_i32_1 = arith.constant 0 : i32
    return %c0_i32, %c0_i32_0 : i32, i32
  }
  func.func @transform_5(%arg0: i32) -> (i32, i32) {
    %c0_i32 = arith.constant 0 : i32
    %c0_i32_0 = arith.constant 0 : i32
    %c0_i32_1 = arith.constant 0 : i32
    return %c0_i32, %c0_i32_0 : i32, i32
  }
  func.func @transform_6(%arg0: i32) -> (i32, i32) {
    %c0_i32 = arith.constant 0 : i32
    %c0_i32_0 = arith.constant 0 : i32
    %c0_i32_1 = arith.constant 0 : i32
    return %c0_i32, %c0_i32_0 : i32, i32
  }
  func.func @transform_7(%arg0: i32) -> (i32, i32) {
    %c0_i32 = arith.constant 0 : i32
    %c0_i32_0 = arith.constant 0 : i32
    %c0_i32_1 = arith.constant 0 : i32
    return %c0_i32, %c0_i32_0 : i32, i32
  }
  func.func @transform_8(%arg0: i32) -> (i32, i32) {
    %c0_i32 = arith.constant 0 : i32
    %c0_i32_0 = arith.constant 0 : i32
    %c0_i32_1 = arith.constant 0 : i32
    return %c0_i32, %c0_i32_0 : i32, i32
  }
  func.func @transform_9(%arg0: i32) -> (i32, i32) {
    %c0_i32 = arith.constant 0 : i32
    %c0_i32_0 = arith.constant 0 : i32
    %c0_i32_1 = arith.constant 0 : i32
    return %c0_i32, %c0_i32_0 : i32, i32
  }
  func.func @transform_10(%arg0: i32) -> (i32, i32) {
    %c0_i32 = arith.constant 0 : i32
    %c0_i32_0 = arith.constant 0 : i32
    %c0_i32_1 = arith.constant 0 : i32
    return %c0_i32, %c0_i32_0 : i32, i32
  }
  func.func @transform_11(%arg0: i32) -> (i32, i32) {
    %c0_i32 = arith.constant 0 : i32
    %c0_i32_0 = arith.constant 0 : i32
    %c0_i32_1 = arith.constant 0 : i32
    return %c0_i32, %c0_i32_0 : i32, i32
  }
  func.func @transform_12(%arg0: i32) -> (i32, i32) {
    %c0_i32 = arith.constant 0 : i32
    %c0_i32_0 = arith.constant 0 : i32
    %c0_i32_1 = arith.constant 0 : i32
    return %c0_i32, %c0_i32_0 : i32, i32
  }
  func.func @transform_13(%arg0: i32) -> (i32, i32) {
    %c0_i32 = arith.constant 0 : i32
    %c0_i32_0 = arith.constant 0 : i32
    %c0_i32_1 = arith.constant 0 : i32
    return %c0_i32, %c0_i32_0 : i32, i32
  }
  func.func @transform_14(%arg0: i32) -> (i32, i32) {
    %c0_i32 = arith.constant 0 : i32
    %c0_i32_0 = arith.constant 0 : i32
    %c0_i32_1 = arith.constant 0 : i32
    return %c0_i32, %c0_i32_0 : i32, i32
  }
  func.func @transform_15(%arg0: i32) -> (i32, i32) {
    %c0_i32 = arith.constant 0 : i32
    %c0_i32_0 = arith.constant 0 : i32
    %c0_i32_1 = arith.constant 0 : i32
    return %c0_i32, %c0_i32_0 : i32, i32
  }
  func.func @transform_16(%arg0: i32) -> (i32, i32) {
    %c0_i32 = arith.constant 0 : i32
    %c0_i32_0 = arith.constant 0 : i32
    %c0_i32_1 = arith.constant 0 : i32
    return %c0_i32, %c0_i32_0 : i32, i32
  }
  func.func @transform_17(%arg0: i32) -> (i32, i32) {
    %c0_i32 = arith.constant 0 : i32
    %c0_i32_0 = arith.constant 0 : i32
    %c0_i32_1 = arith.constant 0 : i32
    return %c0_i32, %c0_i32_0 : i32, i32
  }
  func.func @transform_18(%arg0: i32) -> (i32, i32) {
    %c0_i32 = arith.constant 0 : i32
    %c0_i32_0 = arith.constant 0 : i32
    %c0_i32_1 = arith.constant 0 : i32
    return %c0_i32, %c0_i32_0 : i32, i32
  }
  func.func @transform_19(%arg0: i32) -> (i32, i32) {
    %c0_i32 = arith.constant 0 : i32
    %c0_i32_0 = arith.constant 0 : i32
    %c0_i32_1 = arith.constant 0 : i32
    return %c0_i32, %c0_i32_0 : i32, i32
  }
  func.func @transform_20(%arg0: i32) -> (i32, i32) {
    %c0_i32 = arith.constant 0 : i32
    %c0_i32_0 = arith.constant 0 : i32
    %c0_i32_1 = arith.constant 0 : i32
    return %c0_i32, %c0_i32_0 : i32, i32
  }
  func.func @transform_21(%arg0: i32) -> (i32, i32, i32) {
    %c0_i32 = arith.constant 0 : i32
    %c0_i32_0 = arith.constant 0 : i32
    %c0_i32_1 = arith.constant 0 : i32
    return %arg0, %c0_i32, %c0_i32_0 : i32, i32, i32
  }
  func.func @transform_22(%arg0: i32) -> (i32, i32, i32, i32) {
    %c0_i32 = arith.constant 0 : i32
    %c0_i32_0 = arith.constant 0 : i32
    %c0_i32_1 = arith.constant 0 : i32
    %c0_i32_2 = arith.constant 0 : i32
    return %arg0, %c0_i32, %c0_i32_0, %c0_i32_1 : i32, i32, i32, i32
  }
}

</mosaic_0001>

<llo_original>
// kernel: tpu_custom_call.1
$region0: #{tpu_custom_call.1}
  #allocation0 [shape = 'u32[]', space=smem, size = 0x4, offset = 0x4, fixed_abs, tag = 'smem constant byte address 0x4 - core index']
  #allocation1 [shape = 'u32[72,128]{1,0:T(1,128)}', space=vmem, size = 0x9000, scoped, tag = 'internal scratch']
  #allocation2 [shape = 'f32[18,32]{1,0:T(8,128)}', space=vmem, size = 0x3000, scoped, tag = 'scratch operand']
  #allocation3 [shape = 'f32[18,32]{1,0:T(8,128)}', space=vmem, size = 0x3000, scoped, tag = 'scratch operand']
  #allocation4 [shape = 'f32[2,32]{1,0:T(2,128)}', space=vmem, size = 0x400, scoped, tag = 'scratch operand']
  %s0 = inlined_call_operand.vmem [shape: f32[4,8,32], index: 0, kind: input, shape index: {}]
  %s1 = inlined_call_operand.hbm [shape: f32[1,32], index: 1, kind: input, shape index: {}]
  %s2 = inlined_call_operand.hbm [shape: f32[8,32], index: 2, kind: input, shape index: {}]
  %s3 = inlined_call_operand.hbm [shape: f32[8,32], index: 3, kind: input, shape index: {}]
  %s4 = inlined_call_operand.hbm [shape: f32[8,32], index: 4, kind: input, shape index: {}]
  %s5 = inlined_call_operand.vmem [shape: bf16[32,96], index: 5, kind: input, shape index: {}]
  %s6 = inlined_call_operand.vmem [shape: f32[1,96], index: 6, kind: input, shape index: {}]
  %s7 = inlined_call_operand.vmem [shape: bf16[32,32], index: 7, kind: input, shape index: {}]
  %s8 = inlined_call_operand.hbm [shape: f32[1,32], index: 8, kind: input, shape index: {}]
  %s9 = inlined_call_operand.hbm [shape: f32[1,32], index: 9, kind: input, shape index: {}]
  %s10 = inlined_call_operand.hbm [shape: f32[1,32], index: 10, kind: input, shape index: {}]
  %s11 = inlined_call_operand.vmem [shape: bf16[32,128], index: 11, kind: input, shape index: {}]
  %s12 = inlined_call_operand.hbm [shape: f32[1,128], index: 12, kind: input, shape index: {}]
  %s13 = inlined_call_operand.vmem [shape: bf16[128,32], index: 13, kind: input, shape index: {}]
  %s14 = inlined_call_operand.hbm [shape: f32[1,32], index: 14, kind: input, shape index: {}]
  %s15 = inlined_call_operand.hbm [shape: f32[1,32], index: 15, kind: input, shape index: {}]
  %s16 = inlined_call_operand.hbm [shape: f32[1,32], index: 16, kind: input, shape index: {}]
  %s17 = inlined_call_operand.hbm [shape: bf16[32,32], index: 17, kind: input, shape index: {}]
  %s18 = inlined_call_operand.hbm [shape: f32[1,32], index: 18, kind: input, shape index: {}]
  %s19 = inlined_call_operand.vmem [shape: bf16[32,128], index: 19, kind: input, shape index: {}]
  %s20 = inlined_call_operand.vmem [shape: f32[1,128], index: 20, kind: input, shape index: {}]
  %s21 = inlined_call_operand.hbm [shape: f32[2,2,128], index: 21, kind: output, shape index: {0}]
  %s22 = inlined_call_operand.vmem [shape: f32[2,2,9,9], index: 22, kind: output, shape index: {1}]
  %23 = xla_tuple %s21, %s22
  %s24 = sld [smem:[#allocation0]]
  $region177: #{tpu_custom_call.1} parent=0
    _
  %s26 = ssub.s32 1, %s24
  %s27 = scalar_select 0, %s26, %s24
  $region1: #{tpu_custom_call.1} parent=0
    #allocation5 [shape = 'u8[512]{0}', space=vmem, size = 0x400, scoped, tag = 'input window, operand 1, single buffered']
    #allocation6 [shape = 's32[2]{0}', space=sflag, size = 0x8, scoped, tag = 'scoped memory for tpu_custom_call.1']
    #allocation7 [shape = 's32[2]{0}', space=sflag, size = 0x8, scoped, tag = 'scoped memory for tpu_custom_call.1']
    #allocation8 [shape = 'u8[4096]{0}', space=vmem, size = 0x1000, scoped, tag = 'input window, operand 2, single buffered']
    #allocation9 [shape = 's32[1]{0}', space=sflag, size = 0x4, scoped, tag = 'scoped memory for tpu_custom_call.1']
    #allocation10 [shape = 'u8[4096]{0}', space=vmem, size = 0x1000, scoped, tag = 'input window, operand 3, single buffered']
    #allocation11 [shape = 'u8[4096]{0}', space=vmem, size = 0x1000, scoped, tag = 'input window, operand 4, single buffered']
    #allocation12 [shape = 's32[1]{0}', space=sflag, size = 0x4, scoped, tag = 'scoped memory for tpu_custom_call.1']
    #allocation13 [shape = 'u8[512]{0}', space=vmem, size = 0x400, scoped, tag = 'input window, operand 8, single buffered']
    #allocation14 [shape = 'u8[512]{0}', space=vmem, size = 0x400, scoped, tag = 'input window, operand 9, single buffered']
    #allocation15 [shape = 's32[1]{0}', space=sflag, size = 0x4, scoped, tag = 'scoped memory for tpu_custom_call.1']
    #allocation16 [shape = 'u8[512]{0}', space=vmem, size = 0x400, scoped, tag = 'input window, operand 10, single buffered']
    #allocation17 [shape = 'u8[512]{0}', space=vmem, size = 0x400, scoped, tag = 'input window, operand 12, single buffered']
    #allocation18 [shape = 's32[1]{0}', space=sflag, size = 0x4, scoped, tag = 'scoped memory for tpu_custom_call.1']
    #allocation19 [shape = 'u8[512]{0}', space=vmem, size = 0x400, scoped, tag = 'input window, operand 14, single buffered']
    #allocation20 [shape = 'u8[512]{0}', space=vmem, size = 0x400, scoped, tag = 'input window, operand 15, single buffered']
    #allocation21 [shape = 's32[1]{0}', space=sflag, size = 0x4, scoped, tag = 'scoped memory for tpu_custom_call.1']
    #allocation22 [shape = 'u8[512]{0}', space=vmem, size = 0x400, scoped, tag = 'input window, operand 16, single buffered']
    #allocation23 [shape = 'u8[8192]{0}', space=vmem, size = 0x2000, scoped, tag = 'input window, operand 17, single buffered']
    #allocation24 [shape = 's32[1]{0}', space=sflag, size = 0x4, scoped, tag = 'scoped memory for tpu_custom_call.1']
    #allocation25 [shape = 'u8[512]{0}', space=vmem, size = 0x400, scoped, tag = 'input window, operand 18, single buffered']
    #allocation26 [shape = 'u8[2048]{0}', space=vmem, size = 0x800, scoped, tag = 'output window, operand 0']
    %28 = vsyncpa [#allocation6], 0
    %29 = vsyncpa [#allocation9], 0
    %30 = vsyncpa [#allocation12], 0
    %31 = vsyncpa [#allocation15], 0
    %32 = vsyncpa [#allocation18], 0
    %33 = vsyncpa [#allocation21], 0
    %34 = vsyncpa [#allocation24], 0
    %35 = vsyncpa [#allocation7], 0
    %s36 = scalar_lea.sflag [#allocation7], 1
    %37 = vsyncpa %s36, 0
    loop: start=0, step=1, limit=4
    $region2: #{tpu_custom_call.1} parent=1 // loop_pre_header
      _
    $region3: #{tpu_custom_call.1} parent=1 // loop_header
      %s39 = sphi 0, %s43
      %p40 = scmp.ge.s32.totalorder %s39, 4
      %s49 = sphi 0, %s51
      %s52 = sphi 0, %s49
      %s53 = sphi 0, %s52
      %s69 = sphi 0, %s53
      %s73 = sphi 0, %s73
      %s75 = sphi 0, %s73
      %s76 = sphi 0, %s75
      %s90 = sphi 0, %s76
      %s94 = sphi 0, %s94
      %s96 = sphi 0, %s94
      %s97 = sphi 0, %s96
      %s111 = sphi 0, %s97
      %s115 = sphi 0, %s115
      %s117 = sphi 0, %s115
      %s118 = sphi 0, %s117
      %s132 = sphi 0, %s118
      %s136 = sphi 0, %s136
      %s138 = sphi 0, %s136
      %s139 = sphi 0, %s138
      %s153 = sphi 0, %s139
      %s157 = sphi 0, %s157
      %s159 = sphi 0, %s157
      %s160 = sphi 0, %s159
      %s174 = sphi 0, %s160
      %s178 = sphi 0, %s178
      %s180 = sphi 0, %s178
      %s181 = sphi 0, %s180
      %s195 = sphi 0, %s181
      %s199 = sphi 0, %s199
      %s201 = sphi 0, %s199
      %s202 = sphi 0, %s201
      %s216 = sphi 0, %s202
      %s220 = sphi 0, %s220
      %s222 = sphi 0, %s220
      %s223 = sphi 0, %s222
      %s237 = sphi 0, %s223
      %s241 = sphi 0, %s241
      %s243 = sphi 0, %s241
      %s244 = sphi 0, %s243
      %s258 = sphi 0, %s244
      %s262 = sphi 0, %s262
      %s264 = sphi 0, %s262
      %s265 = sphi 0, %s264
      %s279 = sphi 0, %s265
      %s283 = sphi 0, %s283
      %s285 = sphi 0, %s283
      %s286 = sphi 0, %s285
      %s300 = sphi 0, %s286
      %s304 = sphi 0, %s304
      %s306 = sphi 0, %s304
      %s307 = sphi 0, %s306
      %s321 = sphi 0, %s307
      %s325 = sphi 0, %s325
      %s327 = sphi 0, %s325
      %s328 = sphi 0, %s327
      %s342 = sphi 0, %s328
      %s346 = sphi 0, %s346
      %s348 = sphi 0, %s346
      %s349 = sphi 0, %s348
      %s363 = sphi 0, %s349
      %s367 = sphi 0, %s367
      %s369 = sphi 0, %s367
      %s370 = sphi 0, %s369
      %s384 = sphi 0, %s370
      %s388 = sphi 0, %s388
      %s390 = sphi 0, %s388
      %s391 = sphi 0, %s390
      %s405 = sphi 0, %s391
      %s409 = sphi 0, %s409
      %s411 = sphi 0, %s409
      %s412 = sphi 0, %s411
      %s426 = sphi 0, %s412
      %s430 = sphi 0, %s430
      %s432 = sphi 0, %s430
      %s433 = sphi 0, %s432
      %s447 = sphi 0, %s433
      %s451 = sphi 0, %s451
      %s453 = sphi 0, %s451
      %s454 = sphi 0, %s453
      %s468 = sphi 0, %s454
      %s472 = sphi 0, %s472
      %s474 = sphi 0, %s472
      %s475 = sphi 0, %s474
      %s489 = sphi 0, %s475
      %s495 = sphi 0, %s497
      %s498 = sphi 0, %s495
      %s499 = sphi 0, %s498
      %s515 = sphi 0, %s499
      %s521 = sphi 0, %s523
      %s524 = sphi 0, %s521
      %s525 = sphi 0, %s524
      %s541 = sphi 0, %s525
    $region4: #{tpu_custom_call.1} parent=1 // loop_header_branch
      %42 = sbr.rel (%p40) target = $region8
    $region5: #{tpu_custom_call.1} parent=1 // loop_body
      %s44 = ssub.s32 %s39, 1
      %s45 = ssub.s32 %s39, 2
      %s46 = sadd.s32 %s39, 1
      %s47 = ssub.s32 %s39, %s46
      %p48 = scmp.eq.s32.totalorder %s47, 0
      %s50 = sadd.s32 %s49, 1
      %s51 = scalar_select %p48, %s49, %s50
      %p54 = pneg %p48
      %p55 = scmp.eq.s32.totalorder %s39, 1
      %p56 = por %p54, %p55
      %p57 = scmp.ne.s32.totalorder %s49, %s52
      %p58 = scmp.eq.s32.totalorder %s39, 0
      %p59 = por %p57, %p58
      %p60 = scmp.ne.s32.totalorder %s49, %s52
      %p61 = scmp.eq.s32.totalorder %s44, 1
      %p62 = por %p60, %p61
      %p63 = scmp.ne.s32.totalorder %s52, %s53
      %p64 = scmp.eq.s32.totalorder %s44, 0
      %p65 = por %p63, %p64
      %p66 = scmp.ne.s32.totalorder %s52, %s53
      %p67 = scmp.eq.s32.totalorder %s45, 1
      %p68 = por %p66, %p67
      %p70 = scmp.ne.s32.totalorder %s53, %s69
      %p71 = scmp.eq.s32.totalorder %s45, 0
      %p72 = por %p70, %p71
      %s74 = sadd.s32 %s73, 1
      %p77 = scmp.eq.s32.totalorder %s39, 1
      %p78 = scmp.ne.s32.totalorder %s73, %s75
      %p79 = scmp.eq.s32.totalorder %s39, 0
      %p80 = por %p78, %p79
      %p81 = scmp.ne.s32.totalorder %s73, %s75
      %p82 = scmp.eq.s32.totalorder %s44, 1
      %p83 = por %p81, %p82
      %p84 = scmp.ne.s32.totalorder %s75, %s76
      %p85 = scmp.eq.s32.totalorder %s44, 0
      %p86 = por %p84, %p85
      %p87 = scmp.ne.s32.totalorder %s75, %s76
      %p88 = scmp.eq.s32.totalorder %s45, 1
      %p89 = por %p87, %p88
      %p91 = scmp.ne.s32.totalorder %s76, %s90
      %p92 = scmp.eq.s32.totalorder %s45, 0
      %p93 = por %p91, %p92
      %s95 = sadd.s32 %s94, 1
      %p98 = scmp.eq.s32.totalorder %s39, 1
      %p99 = scmp.ne.s32.totalorder %s94, %s96
      %p100 = scmp.eq.s32.totalorder %s39, 0
      %p101 = por %p99, %p100
      %p102 = scmp.ne.s32.totalorder %s94, %s96
      %p103 = scmp.eq.s32.totalorder %s44, 1
      %p104 = por %p102, %p103
      %p105 = scmp.ne.s32.totalorder %s96, %s97
      %p106 = scmp.eq.s32.totalorder %s44, 0
      %p107 = por %p105, %p106
      %p108 = scmp.ne.s32.totalorder %s96, %s97
      %p109 = scmp.eq.s32.totalorder %s45, 1
      %p110 = por %p108, %p109
      %p112 = scmp.ne.s32.totalorder %s97, %s111
      %p113 = scmp.eq.s32.totalorder %s45, 0
      %p114 = por %p112, %p113
      %s116 = sadd.s32 %s115, 1
      %p119 = scmp.eq.s32.totalorder %s39, 1
      %p120 = scmp.ne.s32.totalorder %s115, %s117
      %p121 = scmp.eq.s32.totalorder %s39, 0
      %p122 = por %p120, %p121
      %p123 = scmp.ne.s32.totalorder %s115, %s117
      %p124 = scmp.eq.s32.totalorder %s44, 1
      %p125 = por %p123, %p124
      %p126 = scmp.ne.s32.totalorder %s117, %s118
      %p127 = scmp.eq.s32.totalorder %s44, 0
      %p128 = por %p126, %p127
      %p129 = scmp.ne.s32.totalorder %s117, %s118
      %p130 = scmp.eq.s32.totalorder %s45, 1
      %p131 = por %p129, %p130
      %p133 = scmp.ne.s32.totalorder %s118, %s132
      %p134 = scmp.eq.s32.totalorder %s45, 0
      %p135 = por %p133, %p134
      %s137 = sadd.s32 %s136, 1
      %p140 = scmp.eq.s32.totalorder %s39, 1
      %p141 = scmp.ne.s32.totalorder %s136, %s138
      %p142 = scmp.eq.s32.totalorder %s39, 0
      %p143 = por %p141, %p142
      %p144 = scmp.ne.s32.totalorder %s136, %s138
      %p145 = scmp.eq.s32.totalorder %s44, 1
      %p146 = por %p144, %p145
      %p147 = scmp.ne.s32.totalorder %s138, %s139
      %p148 = scmp.eq.s32.totalorder %s44, 0
      %p149 = por %p147, %p148
      %p150 = scmp.ne.s32.totalorder %s138, %s139
      %p151 = scmp.eq.s32.totalorder %s45, 1
      %p152 = por %p150, %p151
      %p154 = scmp.ne.s32.totalorder %s139, %s153
      %p155 = scmp.eq.s32.totalorder %s45, 0
      %p156 = por %p154, %p155
      %s158 = sadd.s32 %s157, 1
      %p161 = scmp.eq.s32.totalorder %s39, 1
      %p162 = scmp.ne.s32.totalorder %s157, %s159
      %p163 = scmp.eq.s32.totalorder %s39, 0
      %p164 = por %p162, %p163
      %p165 = scmp.ne.s32.totalorder %s157, %s159
      %p166 = scmp.eq.s32.totalorder %s44, 1
      %p167 = por %p165, %p166
      %p168 = scmp.ne.s32.totalorder %s159, %s160
      %p169 = scmp.eq.s32.totalorder %s44, 0
      %p170 = por %p168, %p169
      %p171 = scmp.ne.s32.totalorder %s159, %s160
      %p172 = scmp.eq.s32.totalorder %s45, 1
      %p173 = por %p171, %p172
      %p175 = scmp.ne.s32.totalorder %s160, %s174
      %p176 = scmp.eq.s32.totalorder %s45, 0
      %p177 = por %p175, %p176
      %s179 = sadd.s32 %s178, 1
      %p182 = scmp.eq.s32.totalorder %s39, 1
      %p183 = scmp.ne.s32.totalorder %s178, %s180
      %p184 = scmp.eq.s32.totalorder %s39, 0
      %p185 = por %p183, %p184
      %p186 = scmp.ne.s32.totalorder %s178, %s180
      %p187 = scmp.eq.s32.totalorder %s44, 1
      %p188 = por %p186, %p187
      %p189 = scmp.ne.s32.totalorder %s180, %s181
      %p190 = scmp.eq.s32.totalorder %s44, 0
      %p191 = por %p189, %p190
      %p192 = scmp.ne.s32.totalorder %s180, %s181
      %p193 = scmp.eq.s32.totalorder %s45, 1
      %p194 = por %p192, %p193
      %p196 = scmp.ne.s32.totalorder %s181, %s195
      %p197 = scmp.eq.s32.totalorder %s45, 0
      %p198 = por %p196, %p197
      %s200 = sadd.s32 %s199, 1
      %p203 = scmp.eq.s32.totalorder %s39, 1
      %p204 = scmp.ne.s32.totalorder %s199, %s201
      %p205 = scmp.eq.s32.totalorder %s39, 0
      %p206 = por %p204, %p205
      %p207 = scmp.ne.s32.totalorder %s199, %s201
      %p208 = scmp.eq.s32.totalorder %s44, 1
      %p209 = por %p207, %p208
      %p210 = scmp.ne.s32.totalorder %s201, %s202
      %p211 = scmp.eq.s32.totalorder %s44, 0
      %p212 = por %p210, %p211
      %p213 = scmp.ne.s32.totalorder %s201, %s202
      %p214 = scmp.eq.s32.totalorder %s45, 1
      %p215 = por %p213, %p214
      %p217 = scmp.ne.s32.totalorder %s202, %s216
      %p218 = scmp.eq.s32.totalorder %s45, 0
      %p219 = por %p217, %p218
      %s221 = sadd.s32 %s220, 1
      %p224 = scmp.eq.s32.totalorder %s39, 1
      %p225 = scmp.ne.s32.totalorder %s220, %s222
      %p226 = scmp.eq.s32.totalorder %s39, 0
      %p227 = por %p225, %p226
      %p228 = scmp.ne.s32.totalorder %s220, %s222
      %p229 = scmp.eq.s32.totalorder %s44, 1
      %p230 = por %p228, %p229
      %p231 = scmp.ne.s32.totalorder %s222, %s223
      %p232 = scmp.eq.s32.totalorder %s44, 0
      %p233 = por %p231, %p232
      %p234 = scmp.ne.s32.totalorder %s222, %s223
      %p235 = scmp.eq.s32.totalorder %s45, 1
      %p236 = por %p234, %p235
      %p238 = scmp.ne.s32.totalorder %s223, %s237
      %p239 = scmp.eq.s32.totalorder %s45, 0
      %p240 = por %p238, %p239
      %s242 = sadd.s32 %s241, 1
      %p245 = scmp.eq.s32.totalorder %s39, 1
      %p246 = scmp.ne.s32.totalorder %s241, %s243
      %p247 = scmp.eq.s32.totalorder %s39, 0
      %p248 = por %p246, %p247
      %p249 = scmp.ne.s32.totalorder %s241, %s243
      %p250 = scmp.eq.s32.totalorder %s44, 1
      %p251 = por %p249, %p250
      %p252 = scmp.ne.s32.totalorder %s243, %s244
      %p253 = scmp.eq.s32.totalorder %s44, 0
      %p254 = por %p252, %p253
      %p255 = scmp.ne.s32.totalorder %s243, %s244
      %p256 = scmp.eq.s32.totalorder %s45, 1
      %p257 = por %p255, %p256
      %p259 = scmp.ne.s32.totalorder %s244, %s258
      %p260 = scmp.eq.s32.totalorder %s45, 0
      %p261 = por %p259, %p260
      %s263 = sadd.s32 %s262, 1
      %p266 = scmp.eq.s32.totalorder %s39, 1
      %p267 = scmp.ne.s32.totalorder %s262, %s264
      %p268 = scmp.eq.s32.totalorder %s39, 0
      %p269 = por %p267, %p268
      %p270 = scmp.ne.s32.totalorder %s262, %s264
      %p271 = scmp.eq.s32.totalorder %s44, 1
      %p272 = por %p270, %p271
      %p273 = scmp.ne.s32.totalorder %s264, %s265
      %p274 = scmp.eq.s32.totalorder %s44, 0
      %p275 = por %p273, %p274
      %p276 = scmp.ne.s32.totalorder %s264, %s265
      %p277 = scmp.eq.s32.totalorder %s45, 1
      %p278 = por %p276, %p277
      %p280 = scmp.ne.s32.totalorder %s265, %s279
      %p281 = scmp.eq.s32.totalorder %s45, 0
      %p282 = por %p280, %p281
      %s284 = sadd.s32 %s283, 1
      %p287 = scmp.eq.s32.totalorder %s39, 1
      %p288 = scmp.ne.s32.totalorder %s283, %s285
      %p289 = scmp.eq.s32.totalorder %s39, 0
      %p290 = por %p288, %p289
      %p291 = scmp.ne.s32.totalorder %s283, %s285
      %p292 = scmp.eq.s32.totalorder %s44, 1
      %p293 = por %p291, %p292
      %p294 = scmp.ne.s32.totalorder %s285, %s286
      %p295 = scmp.eq.s32.totalorder %s44, 0
      %p296 = por %p294, %p295
      %p297 = scmp.ne.s32.totalorder %s285, %s286
      %p298 = scmp.eq.s32.totalorder %s45, 1
      %p299 = por %p297, %p298
      %p301 = scmp.ne.s32.totalorder %s286, %s300
      %p302 = scmp.eq.s32.totalorder %s45, 0
      %p303 = por %p301, %p302
      %s305 = sadd.s32 %s304, 1
      %p308 = scmp.eq.s32.totalorder %s39, 1
      %p309 = scmp.ne.s32.totalorder %s304, %s306
      %p310 = scmp.eq.s32.totalorder %s39, 0
      %p311 = por %p309, %p310
      %p312 = scmp.ne.s32.totalorder %s304, %s306
      %p313 = scmp.eq.s32.totalorder %s44, 1
      %p314 = por %p312, %p313
      %p315 = scmp.ne.s32.totalorder %s306, %s307
      %p316 = scmp.eq.s32.totalorder %s44, 0
      %p317 = por %p315, %p316
      %p318 = scmp.ne.s32.totalorder %s306, %s307
      %p319 = scmp.eq.s32.totalorder %s45, 1
      %p320 = por %p318, %p319
      %p322 = scmp.ne.s32.totalorder %s307, %s321
      %p323 = scmp.eq.s32.totalorder %s45, 0
      %p324 = por %p322, %p323
      %s326 = sadd.s32 %s325, 1
      %p329 = scmp.eq.s32.totalorder %s39, 1
      %p330 = scmp.ne.s32.totalorder %s325, %s327
      %p331 = scmp.eq.s32.totalorder %s39, 0
      %p332 = por %p330, %p331
      %p333 = scmp.ne.s32.totalorder %s325, %s327
      %p334 = scmp.eq.s32.totalorder %s44, 1
      %p335 = por %p333, %p334
      %p336 = scmp.ne.s32.totalorder %s327, %s328
      %p337 = scmp.eq.s32.totalorder %s44, 0
      %p338 = por %p336, %p337
      %p339 = scmp.ne.s32.totalorder %s327, %s328
      %p340 = scmp.eq.s32.totalorder %s45, 1
      %p341 = por %p339, %p340
      %p343 = scmp.ne.s32.totalorder %s328, %s342
      %p344 = scmp.eq.s32.totalorder %s45, 0
      %p345 = por %p343, %p344
      %s347 = sadd.s32 %s346, 1
      %p350 = scmp.eq.s32.totalorder %s39, 1
      %p351 = scmp.ne.s32.totalorder %s346, %s348
      %p352 = scmp.eq.s32.totalorder %s39, 0
      %p353 = por %p351, %p352
      %p354 = scmp.ne.s32.totalorder %s346, %s348
      %p355 = scmp.eq.s32.totalorder %s44, 1
      %p356 = por %p354, %p355
      %p357 = scmp.ne.s32.totalorder %s348, %s349
      %p358 = scmp.eq.s32.totalorder %s44, 0
      %p359 = por %p357, %p358
      %p360 = scmp.ne.s32.totalorder %s348, %s349
      %p361 = scmp.eq.s32.totalorder %s45, 1
      %p362 = por %p360, %p361
      %p364 = scmp.ne.s32.totalorder %s349, %s363
      %p365 = scmp.eq.s32.totalorder %s45, 0
      %p366 = por %p364, %p365
      %s368 = sadd.s32 %s367, 1
      %p371 = scmp.eq.s32.totalorder %s39, 1
      %p372 = scmp.ne.s32.totalorder %s367, %s369
      %p373 = scmp.eq.s32.totalorder %s39, 0
      %p374 = por %p372, %p373
      %p375 = scmp.ne.s32.totalorder %s367, %s369
      %p376 = scmp.eq.s32.totalorder %s44, 1
      %p377 = por %p375, %p376
      %p378 = scmp.ne.s32.totalorder %s369, %s370
      %p379 = scmp.eq.s32.totalorder %s44, 0
      %p380 = por %p378, %p379
      %p381 = scmp.ne.s32.totalorder %s369, %s370
      %p382 = scmp.eq.s32.totalorder %s45, 1
      %p383 = por %p381, %p382
      %p385 = scmp.ne.s32.totalorder %s370, %s384
      %p386 = scmp.eq.s32.totalorder %s45, 0
      %p387 = por %p385, %p386
      %s389 = sadd.s32 %s388, 1
      %p392 = scmp.eq.s32.totalorder %s39, 1
      %p393 = scmp.ne.s32.totalorder %s388, %s390
      %p394 = scmp.eq.s32.totalorder %s39, 0
      %p395 = por %p393, %p394
      %p396 = scmp.ne.s32.totalorder %s388, %s390
      %p397 = scmp.eq.s32.totalorder %s44, 1
      %p398 = por %p396, %p397
      %p399 = scmp.ne.s32.totalorder %s390, %s391
      %p400 = scmp.eq.s32.totalorder %s44, 0
      %p401 = por %p399, %p400
      %p402 = scmp.ne.s32.totalorder %s390, %s391
      %p403 = scmp.eq.s32.totalorder %s45, 1
      %p404 = por %p402, %p403
      %p406 = scmp.ne.s32.totalorder %s391, %s405
      %p407 = scmp.eq.s32.totalorder %s45, 0
      %p408 = por %p406, %p407
      %s410 = sadd.s32 %s409, 1
      %p413 = scmp.eq.s32.totalorder %s39, 1
      %p414 = scmp.ne.s32.totalorder %s409, %s411
      %p415 = scmp.eq.s32.totalorder %s39, 0
      %p416 = por %p414, %p415
      %p417 = scmp.ne.s32.totalorder %s409, %s411
      %p418 = scmp.eq.s32.totalorder %s44, 1
      %p419 = por %p417, %p418
      %p420 = scmp.ne.s32.totalorder %s411, %s412
      %p421 = scmp.eq.s32.totalorder %s44, 0
      %p422 = por %p420, %p421
      %p423 = scmp.ne.s32.totalorder %s411, %s412
      %p424 = scmp.eq.s32.totalorder %s45, 1
      %p425 = por %p423, %p424
      %p427 = scmp.ne.s32.totalorder %s412, %s426
      %p428 = scmp.eq.s32.totalorder %s45, 0
      %p429 = por %p427, %p428
      %s431 = sadd.s32 %s430, 1
      %p434 = scmp.eq.s32.totalorder %s39, 1
      %p435 = scmp.ne.s32.totalorder %s430, %s432
      %p436 = scmp.eq.s32.totalorder %s39, 0
      %p437 = por %p435, %p436
      %p438 = scmp.ne.s32.totalorder %s430, %s432
      %p439 = scmp.eq.s32.totalorder %s44, 1
      %p440 = por %p438, %p439
      %p441 = scmp.ne.s32.totalorder %s432, %s433
      %p442 = scmp.eq.s32.totalorder %s44, 0
      %p443 = por %p441, %p442
      %p444 = scmp.ne.s32.totalorder %s432, %s433
      %p445 = scmp.eq.s32.totalorder %s45, 1
      %p446 = por %p444, %p445
      %p448 = scmp.ne.s32.totalorder %s433, %s447
      %p449 = scmp.eq.s32.totalorder %s45, 0
      %p450 = por %p448, %p449
      %s452 = sadd.s32 %s451, 1
      %p455 = scmp.eq.s32.totalorder %s39, 1
      %p456 = scmp.ne.s32.totalorder %s451, %s453
      %p457 = scmp.eq.s32.totalorder %s39, 0
      %p458 = por %p456, %p457
      %p459 = scmp.ne.s32.totalorder %s451, %s453
      %p460 = scmp.eq.s32.totalorder %s44, 1
      %p461 = por %p459, %p460
      %p462 = scmp.ne.s32.totalorder %s453, %s454
      %p463 = scmp.eq.s32.totalorder %s44, 0
      %p464 = por %p462, %p463
      %p465 = scmp.ne.s32.totalorder %s453, %s454
      %p466 = scmp.eq.s32.totalorder %s45, 1
      %p467 = por %p465, %p466
      %p469 = scmp.ne.s32.totalorder %s454, %s468
      %p470 = scmp.eq.s32.totalorder %s45, 0
      %p471 = por %p469, %p470
      %s473 = sadd.s32 %s472, 1
      %p476 = scmp.eq.s32.totalorder %s39, 1
      %p477 = scmp.ne.s32.totalorder %s472, %s474
      %p478 = scmp.eq.s32.totalorder %s39, 0
      %p479 = por %p477, %p478
      %p480 = scmp.ne.s32.totalorder %s472, %s474
      %p481 = scmp.eq.s32.totalorder %s44, 1
      %p482 = por %p480, %p481
      %p483 = scmp.ne.s32.totalorder %s474, %s475
      %p484 = scmp.eq.s32.totalorder %s44, 0
      %p485 = por %p483, %p484
      %p486 = scmp.ne.s32.totalorder %s474, %s475
      %p487 = scmp.eq.s32.totalorder %s45, 1
      %p488 = por %p486, %p487
      %p490 = scmp.ne.s32.totalorder %s475, %s489
      %p491 = scmp.eq.s32.totalorder %s45, 0
      %p492 = por %p490, %p491
      %s493 = ssub.s32 %s39, %s46
      %p494 = scmp.eq.s32.totalorder %s493, 0
      %s496 = sadd.s32 %s495, 1
      %s497 = scalar_select %p494, %s495, %s496
      %p500 = pneg %p494
      %p501 = scmp.eq.s32.totalorder %s39, 1
      %p502 = por %p500, %p501
      %p503 = scmp.ne.s32.totalorder %s495, %s498
      %p504 = scmp.eq.s32.totalorder %s39, 0
      %p505 = por %p503, %p504
      %p506 = scmp.ne.s32.totalorder %s495, %s498
      %p507 = scmp.eq.s32.totalorder %s44, 1
      %p508 = por %p506, %p507
      %p509 = scmp.ne.s32.totalorder %s498, %s499
      %p510 = scmp.eq.s32.totalorder %s44, 0
      %p511 = por %p509, %p510
      %p512 = scmp.ne.s32.totalorder %s498, %s499
      %p513 = scmp.eq.s32.totalorder %s45, 1
      %p514 = por %p512, %p513
      %p516 = scmp.ne.s32.totalorder %s499, %s515
      %p517 = scmp.eq.s32.totalorder %s45, 0
      %p518 = por %p516, %p517
      %s519 = ssub.s32 %s39, %s46
      %p520 = scmp.eq.s32.totalorder %s519, 0
      %s522 = sadd.s32 %s521, 1
      %s523 = scalar_select %p520, %s521, %s522
      %p526 = pneg %p520
      %p527 = scmp.eq.s32.totalorder %s39, 1
      %p528 = por %p526, %p527
      %p529 = scmp.ne.s32.totalorder %s521, %s524
      %p530 = scmp.eq.s32.totalorder %s39, 0
      %p531 = por %p529, %p530
      %p532 = scmp.ne.s32.totalorder %s521, %s524
      %p533 = scmp.eq.s32.totalorder %s44, 1
      %p534 = por %p532, %p533
      %p535 = scmp.ne.s32.totalorder %s524, %s525
      %p536 = scmp.eq.s32.totalorder %s44, 0
      %p537 = por %p535, %p536
      %p538 = scmp.ne.s32.totalorder %s524, %s525
      %p539 = scmp.eq.s32.totalorder %s45, 1
      %p540 = por %p538, %p539
      %p542 = scmp.ne.s32.totalorder %s525, %s541
      %p543 = scmp.eq.s32.totalorder %s45, 0
      %p544 = por %p542, %p543
      %p545 = scmp.le.s32.totalorder 1, %s39
      %p546 = scmp.lt.s32.totalorder %s39, 3
      %p547 = pnand %p545, %p546
      %p548 = pneg %p547
      // Predicated region
      $region9: #{tpu_custom_call.1} parent=5 // pred_check
        _
      $region10: #{tpu_custom_call.1} parent=5 // pred_check_branch
        %550 = sbr.rel (%p547) target = $region12
      $region11: #{tpu_custom_call.1} parent=5 // pred_region
        %s551 = ssub.s32 %s39, 1
        // Predicated region
        $region13: #{tpu_custom_call.1} parent=11 // pred_check
          %p552 = pneg %p86
        $region14: #{tpu_custom_call.1} parent=11 // pred_check_branch
          %554 = sbr.rel (%p552) target = $region16
        $region15: #{tpu_custom_call.1} parent=11 // pred_region
          %556 = vsyncadd [#allocation6], 0
          %s558 = sshll.u32 %s1, 4
          %s559 = int_to_ptr.hbm [resolvable:$true] %s558
          %s560 = sshll.u32 [#allocation5], 4
          %s561 = int_to_ptr.vmem [resolvable:$true] %s560
          %563 = dma.hbm_to_vmem [thread:$0]  %s559, 16, %s561, [#allocation6]
        $region16: #{tpu_custom_call.1} parent=11 // pred_fallthru
          _
        // Predicated region
        $region17: #{tpu_custom_call.1} parent=11 // pred_check
          %p564 = pneg %p107
        $region18: #{tpu_custom_call.1} parent=11 // pred_check_branch
          %566 = sbr.rel (%p564) target = $region20
        $region19: #{tpu_custom_call.1} parent=11 // pred_region
          %568 = vsyncadd [#allocation9], 0
          %s570 = sshll.u32 %s2, 4
          %s571 = int_to_ptr.hbm [resolvable:$true] %s570
          %s572 = sshll.u32 [#allocation8], 4
          %s573 = int_to_ptr.vmem [resolvable:$true] %s572
          %575 = dma.hbm_to_vmem [thread:$0]  %s571, 128, %s573, [#allocation9]
        $region20: #{tpu_custom_call.1} parent=11 // pred_fallthru
          _
        // Predicated region
        $region21: #{tpu_custom_call.1} parent=11 // pred_check
          %p576 = pneg %p128
        $region22: #{tpu_custom_call.1} parent=11 // pred_check_branch
          %578 = sbr.rel (%p576) target = $region24
        $region23: #{tpu_custom_call.1} parent=11 // pred_region
          %580 = vsyncadd [#allocation9], 0
          %s582 = sshll.u32 %s3, 4
          %s583 = int_to_ptr.hbm [resolvable:$true] %s582
          %s584 = sshll.u32 [#allocation10], 4
          %s585 = int_to_ptr.vmem [resolvable:$true] %s584
          %587 = dma.hbm_to_vmem [thread:$0]  %s583, 128, %s585, [#allocation9]
        $region24: #{tpu_custom_call.1} parent=11 // pred_fallthru
          _
        // Predicated region
        $region25: #{tpu_custom_call.1} parent=11 // pred_check
          %p588 = pneg %p149
        $region26: #{tpu_custom_call.1} parent=11 // pred_check_branch
          %590 = sbr.rel (%p588) target = $region28
        $region27: #{tpu_custom_call.1} parent=11 // pred_region
          %592 = vsyncadd [#allocation12], 0
          %s594 = sshll.u32 %s4, 4
          %s595 = int_to_ptr.hbm [resolvable:$true] %s594
          %s596 = sshll.u32 [#allocation11], 4
          %s597 = int_to_ptr.vmem [resolvable:$true] %s596
          %599 = dma.hbm_to_vmem [thread:$0]  %s595, 128, %s597, [#allocation12]
        $region28: #{tpu_custom_call.1} parent=11 // pred_fallthru
          _
        // Predicated region
        $region29: #{tpu_custom_call.1} parent=11 // pred_check
          %p600 = pneg %p170
        $region30: #{tpu_custom_call.1} parent=11 // pred_check_branch
          %602 = sbr.rel (%p600) target = $region32
        $region31: #{tpu_custom_call.1} parent=11 // pred_region
          _
        $region32: #{tpu_custom_call.1} parent=11 // pred_fallthru
          _
        // Predicated region
        $region33: #{tpu_custom_call.1} parent=11 // pred_check
          %p603 = pneg %p191
        $region34: #{tpu_custom_call.1} parent=11 // pred_check_branch
          %605 = sbr.rel (%p603) target = $region36
        $region35: #{tpu_custom_call.1} parent=11 // pred_region
          _
        $region36: #{tpu_custom_call.1} parent=11 // pred_fallthru
          _
        // Predicated region
        $region37: #{tpu_custom_call.1} parent=11 // pred_check
          %p606 = pneg %p212
        $region38: #{tpu_custom_call.1} parent=11 // pred_check_branch
          %608 = sbr.rel (%p606) target = $region40
        $region39: #{tpu_custom_call.1} parent=11 // pred_region
          _
        $region40: #{tpu_custom_call.1} parent=11 // pred_fallthru
          _
        // Predicated region
        $region41: #{tpu_custom_call.1} parent=11 // pred_check
          %p609 = pneg %p233
        $region42: #{tpu_custom_call.1} parent=11 // pred_check_branch
          %611 = sbr.rel (%p609) target = $region44
        $region43: #{tpu_custom_call.1} parent=11 // pred_region
          %613 = vsyncadd [#allocation12], 0
          %s615 = sshll.u32 %s8, 4
          %s616 = int_to_ptr.hbm [resolvable:$true] %s615
          %s617 = sshll.u32 [#allocation13], 4
          %s618 = int_to_ptr.vmem [resolvable:$true] %s617
          %620 = dma.hbm_to_vmem [thread:$0]  %s616, 16, %s618, [#allocation12]
        $region44: #{tpu_custom_call.1} parent=11 // pred_fallthru
          _
        // Predicated region
        $region45: #{tpu_custom_call.1} parent=11 // pred_check
          %p621 = pneg %p254
        $region46: #{tpu_custom_call.1} parent=11 // pred_check_branch
          %623 = sbr.rel (%p621) target = $region48
        $region47: #{tpu_custom_call.1} parent=11 // pred_region
          %625 = vsyncadd [#allocation15], 0
          %s627 = sshll.u32 %s9, 4
          %s628 = int_to_ptr.hbm [resolvable:$true] %s627
          %s629 = sshll.u32 [#allocation14], 4
          %s630 = int_to_ptr.vmem [resolvable:$true] %s629
          %632 = dma.hbm_to_vmem [thread:$0]  %s628, 16, %s630, [#allocation15]
        $region48: #{tpu_custom_call.1} parent=11 // pred_fallthru
          _
        // Predicated region
        $region49: #{tpu_custom_call.1} parent=11 // pred_check
          %p633 = pneg %p275
        $region50: #{tpu_custom_call.1} parent=11 // pred_check_branch
          %635 = sbr.rel (%p633) target = $region52
        $region51: #{tpu_custom_call.1} parent=11 // pred_region
          %637 = vsyncadd [#allocation15], 0
          %s639 = sshll.u32 %s10, 4
          %s640 = int_to_ptr.hbm [resolvable:$true] %s639
          %s641 = sshll.u32 [#allocation16], 4
          %s642 = int_to_ptr.vmem [resolvable:$true] %s641
          %644 = dma.hbm_to_vmem [thread:$0]  %s640, 16, %s642, [#allocation15]
        $region52: #{tpu_custom_call.1} parent=11 // pred_fallthru
          _
        // Predicated region
        $region53: #{tpu_custom_call.1} parent=11 // pred_check
          %p645 = pneg %p296
        $region54: #{tpu_custom_call.1} parent=11 // pred_check_branch
          %647 = sbr.rel (%p645) target = $region56
        $region55: #{tpu_custom_call.1} parent=11 // pred_region
          _
        $region56: #{tpu_custom_call.1} parent=11 // pred_fallthru
          _
        // Predicated region
        $region57: #{tpu_custom_call.1} parent=11 // pred_check
          %p648 = pneg %p317
        $region58: #{tpu_custom_call.1} parent=11 // pred_check_branch
          %650 = sbr.rel (%p648) target = $region60
        $region59: #{tpu_custom_call.1} parent=11 // pred_region
          %652 = vsyncadd [#allocation18], 0
          %s654 = sshll.u32 %s12, 4
          %s655 = int_to_ptr.hbm [resolvable:$true] %s654
          %s656 = sshll.u32 [#allocation17], 4
          %s657 = int_to_ptr.vmem [resolvable:$true] %s656
          %659 = dma.hbm_to_vmem [thread:$0]  %s655, 16, %s657, [#allocation18]
        $region60: #{tpu_custom_call.1} parent=11 // pred_fallthru
          _
        // Predicated region
        $region61: #{tpu_custom_call.1} parent=11 // pred_check
          %p660 = pneg %p338
        $region62: #{tpu_custom_call.1} parent=11 // pred_check_branch
          %662 = sbr.rel (%p660) target = $region64
        $region63: #{tpu_custom_call.1} parent=11 // pred_region
          _
        $region64: #{tpu_custom_call.1} parent=11 // pred_fallthru
          _
        // Predicated region
        $region65: #{tpu_custom_call.1} parent=11 // pred_check
          %p663 = pneg %p359
        $region66: #{tpu_custom_call.1} parent=11 // pred_check_branch
          %665 = sbr.rel (%p663) target = $region68
        $region67: #{tpu_custom_call.1} parent=11 // pred_region
          %667 = vsyncadd [#allocation18], 0
          %s669 = sshll.u32 %s14, 4
          %s670 = int_to_ptr.hbm [resolvable:$true] %s669
          %s671 = sshll.u32 [#allocation19], 4
          %s672 = int_to_ptr.vmem [resolvable:$true] %s671
          %674 = dma.hbm_to_vmem [thread:$0]  %s670, 16, %s672, [#allocation18]
        $region68: #{tpu_custom_call.1} parent=11 // pred_fallthru
          _
        // Predicated region
        $region69: #{tpu_custom_call.1} parent=11 // pred_check
          %p675 = pneg %p380
        $region70: #{tpu_custom_call.1} parent=11 // pred_check_branch
          %677 = sbr.rel (%p675) target = $region72
        $region71: #{tpu_custom_call.1} parent=11 // pred_region
          %679 = vsyncadd [#allocation21], 0
          %s681 = sshll.u32 %s15, 4
          %s682 = int_to_ptr.hbm [resolvable:$true] %s681
          %s683 = sshll.u32 [#allocation20], 4
          %s684 = int_to_ptr.vmem [resolvable:$true] %s683
          %686 = dma.hbm_to_vmem [thread:$0]  %s682, 16, %s684, [#allocation21]
        $region72: #{tpu_custom_call.1} parent=11 // pred_fallthru
          _
        // Predicated region
        $region73: #{tpu_custom_call.1} parent=11 // pred_check
          %p687 = pneg %p401
        $region74: #{tpu_custom_call.1} parent=11 // pred_check_branch
          %689 = sbr.rel (%p687) target = $region76
        $region75: #{tpu_custom_call.1} parent=11 // pred_region
          %691 = vsyncadd [#allocation21], 0
          %s693 = sshll.u32 %s16, 4
          %s694 = int_to_ptr.hbm [resolvable:$true] %s693
          %s695 = sshll.u32 [#allocation22], 4
          %s696 = int_to_ptr.vmem [resolvable:$true] %s695
          %698 = dma.hbm_to_vmem [thread:$0]  %s694, 16, %s696, [#allocation21]
        $region76: #{tpu_custom_call.1} parent=11 // pred_fallthru
          _
        // Predicated region
        $region77: #{tpu_custom_call.1} parent=11 // pred_check
          %p699 = pneg %p422
        $region78: #{tpu_custom_call.1} parent=11 // pred_check_branch
          %701 = sbr.rel (%p699) target = $region80
        $region79: #{tpu_custom_call.1} parent=11 // pred_region
          %703 = vsyncadd [#allocation24], 0
          %s704 = sshll.u32 %s17, 4
          %s705 = int_to_ptr.hbm [resolvable:$true] %s704
          %s706 = sshll.u32 [#allocation23], 4
          %s707 = int_to_ptr.vmem [resolvable:$true] %s706
          %712 = dma.hbm_to_vmem [thread:$0]  %s705, 256, %s707, [#allocation24], 64, 64, 4
        $region80: #{tpu_custom_call.1} parent=11 // pred_fallthru
          _
        // Predicated region
        $region81: #{tpu_custom_call.1} parent=11 // pred_check
          %p713 = pneg %p443
        $region82: #{tpu_custom_call.1} parent=11 // pred_check_branch
          %715 = sbr.rel (%p713) target = $region84
        $region83: #{tpu_custom_call.1} parent=11 // pred_region
          %717 = vsyncadd [#allocation24], 0
          %s719 = sshll.u32 %s18, 4
          %s720 = int_to_ptr.hbm [resolvable:$true] %s719
          %s721 = sshll.u32 [#allocation25], 4
          %s722 = int_to_ptr.vmem [resolvable:$true] %s721
          %724 = dma.hbm_to_vmem [thread:$0]  %s720, 16, %s722, [#allocation24]
        $region84: #{tpu_custom_call.1} parent=11 // pred_fallthru
          _
        // Predicated region
        $region85: #{tpu_custom_call.1} parent=11 // pred_check
          %p725 = pneg %p464
        $region86: #{tpu_custom_call.1} parent=11 // pred_check_branch
          %727 = sbr.rel (%p725) target = $region88
        $region87: #{tpu_custom_call.1} parent=11 // pred_region
          _
        $region88: #{tpu_custom_call.1} parent=11 // pred_fallthru
          _
        // Predicated region
        $region89: #{tpu_custom_call.1} parent=11 // pred_check
          %p728 = pneg %p485
        $region90: #{tpu_custom_call.1} parent=11 // pred_check_branch
          %730 = sbr.rel (%p728) target = $region92
        $region91: #{tpu_custom_call.1} parent=11 // pred_region
          _
        $region92: #{tpu_custom_call.1} parent=11 // pred_fallthru
          _
      $region12: #{tpu_custom_call.1} parent=5 // pred_fallthru
        _
      %p731 = scmp.lt.s32.totalorder %s39, 2
      // Predicated region
      $region93: #{tpu_custom_call.1} parent=5 // pred_check
        %p732 = pneg %p731
      $region94: #{tpu_custom_call.1} parent=5 // pred_check_branch
        %734 = sbr.rel (%p732) target = $region96
      $region95: #{tpu_custom_call.1} parent=5 // pred_region
        // Predicated region
        $region97: #{tpu_custom_call.1} parent=95 // pred_check
          %p735 = pneg %p59
        $region98: #{tpu_custom_call.1} parent=95 // pred_check_branch
          %737 = sbr.rel (%p735) target = $region100
        $region99: #{tpu_custom_call.1} parent=95 // pred_region
          %s738 = smul.u32 2, %s39
          %p739 = scmp.lt.s32.totalorder %s738, 3
          %s740 = scalar_select %p739, %s738, 3
          %s741 = smul.addr %s740, 8
          %s742 = scalar_lea.vmem %s0, %s741
          %s743 = smul.u32 2, %s39
        $region100: #{tpu_custom_call.1} parent=95 // pred_fallthru
          _
      $region96: #{tpu_custom_call.1} parent=5 // pred_fallthru
        _
      %p744 = scmp.le.s32.totalorder 1, %s39
      %p745 = scmp.lt.s32.totalorder %s39, 3
      %p746 = pnand %p744, %p745
      %p747 = pneg %p746
      // Predicated region
      $region101: #{tpu_custom_call.1} parent=5 // pred_check
        _
      $region102: #{tpu_custom_call.1} parent=5 // pred_check_branch
        %749 = sbr.rel (%p746) target = $region104
      $region103: #{tpu_custom_call.1} parent=5 // pred_region
        %s750 = ssub.s32 %s39, 1
        // Predicated region
        $region105: #{tpu_custom_call.1} parent=103 // pred_check
          %p751 = pneg %p86
        $region106: #{tpu_custom_call.1} parent=103 // pred_check_branch
          %753 = sbr.rel (%p751) target = $region108
        $region107: #{tpu_custom_call.1} parent=103 // pred_region
          %755 = dma.done [#allocation6], 16
        $region108: #{tpu_custom_call.1} parent=103 // pred_fallthru
          _
        // Predicated region
        $region109: #{tpu_custom_call.1} parent=103 // pred_check
          %p756 = pneg %p107
        $region110: #{tpu_custom_call.1} parent=103 // pred_check_branch
          %758 = sbr.rel (%p756) target = $region112
        $region111: #{tpu_custom_call.1} parent=103 // pred_region
          %760 = dma.done [#allocation9], 128
        $region112: #{tpu_custom_call.1} parent=103 // pred_fallthru
          _
        // Predicated region
        $region113: #{tpu_custom_call.1} parent=103 // pred_check
          %p761 = pneg %p128
        $region114: #{tpu_custom_call.1} parent=103 // pred_check_branch
          %763 = sbr.rel (%p761) target = $region116
        $region115: #{tpu_custom_call.1} parent=103 // pred_region
          %765 = dma.done [#allocation9], 128
        $region116: #{tpu_custom_call.1} parent=103 // pred_fallthru
          _
        // Predicated region
        $region117: #{tpu_custom_call.1} parent=103 // pred_check
          %p766 = pneg %p149
        $region118: #{tpu_custom_call.1} parent=103 // pred_check_branch
          %768 = sbr.rel (%p766) target = $region120
        $region119: #{tpu_custom_call.1} parent=103 // pred_region
          %770 = dma.done [#allocation12], 128
        $region120: #{tpu_custom_call.1} parent=103 // pred_fallthru
          _
        // Predicated region
        $region121: #{tpu_custom_call.1} parent=103 // pred_check
          %p771 = pneg %p233
        $region122: #{tpu_custom_call.1} parent=103 // pred_check_branch
          %773 = sbr.rel (%p771) target = $region124
        $region123: #{tpu_custom_call.1} parent=103 // pred_region
          %775 = dma.done [#allocation12], 16
        $region124: #{tpu_custom_call.1} parent=103 // pred_fallthru
          _
        // Predicated region
        $region125: #{tpu_custom_call.1} parent=103 // pred_check
          %p776 = pneg %p254
        $region126: #{tpu_custom_call.1} parent=103 // pred_check_branch
          %778 = sbr.rel (%p776) target = $region128
        $region127: #{tpu_custom_call.1} parent=103 // pred_region
          %780 = dma.done [#allocation15], 16
        $region128: #{tpu_custom_call.1} parent=103 // pred_fallthru
          _
        // Predicated region
        $region129: #{tpu_custom_call.1} parent=103 // pred_check
          %p781 = pneg %p275
        $region130: #{tpu_custom_call.1} parent=103 // pred_check_branch
          %783 = sbr.rel (%p781) target = $region132
        $region131: #{tpu_custom_call.1} parent=103 // pred_region
          %785 = dma.done [#allocation15], 16
        $region132: #{tpu_custom_call.1} parent=103 // pred_fallthru
          _
        // Predicated region
        $region133: #{tpu_custom_call.1} parent=103 // pred_check
          %p786 = pneg %p317
        $region134: #{tpu_custom_call.1} parent=103 // pred_check_branch
          %788 = sbr.rel (%p786) target = $region136
        $region135: #{tpu_custom_call.1} parent=103 // pred_region
          %790 = dma.done [#allocation18], 16
        $region136: #{tpu_custom_call.1} parent=103 // pred_fallthru
          _
        // Predicated region
        $region137: #{tpu_custom_call.1} parent=103 // pred_check
          %p791 = pneg %p359
        $region138: #{tpu_custom_call.1} parent=103 // pred_check_branch
          %793 = sbr.rel (%p791) target = $region140
        $region139: #{tpu_custom_call.1} parent=103 // pred_region
          %795 = dma.done [#allocation18], 16
        $region140: #{tpu_custom_call.1} parent=103 // pred_fallthru
          _
        // Predicated region
        $region141: #{tpu_custom_call.1} parent=103 // pred_check
          %p796 = pneg %p380
        $region142: #{tpu_custom_call.1} parent=103 // pred_check_branch
          %798 = sbr.rel (%p796) target = $region144
        $region143: #{tpu_custom_call.1} parent=103 // pred_region
          %800 = dma.done [#allocation21], 16
        $region144: #{tpu_custom_call.1} parent=103 // pred_fallthru
          _
        // Predicated region
        $region145: #{tpu_custom_call.1} parent=103 // pred_check
          %p801 = pneg %p401
        $region146: #{tpu_custom_call.1} parent=103 // pred_check_branch
          %803 = sbr.rel (%p801) target = $region148
        $region147: #{tpu_custom_call.1} parent=103 // pred_region
          %805 = dma.done [#allocation21], 16
        $region148: #{tpu_custom_call.1} parent=103 // pred_fallthru
          _
        // Predicated region
        $region149: #{tpu_custom_call.1} parent=103 // pred_check
          %p806 = pneg %p422
        $region150: #{tpu_custom_call.1} parent=103 // pred_check_branch
          %808 = sbr.rel (%p806) target = $region152
        $region151: #{tpu_custom_call.1} parent=103 // pred_region
          %810 = dma.done [#allocation24], 256
        $region152: #{tpu_custom_call.1} parent=103 // pred_fallthru
          _
        // Predicated region
        $region153: #{tpu_custom_call.1} parent=103 // pred_check
          %p811 = pneg %p443
        $region154: #{tpu_custom_call.1} parent=103 // pred_check_branch
          %813 = sbr.rel (%p811) target = $region156
        $region155: #{tpu_custom_call.1} parent=103 // pred_region
          %815 = dma.done [#allocation24], 16
        $region156: #{tpu_custom_call.1} parent=103 // pred_fallthru
          _
        %s816 = smul.u32 2, %s44
        %p817 = scmp.lt.s32.totalorder %s816, 3
        %s818 = scalar_select %p817, %s816, 3
        %s819 = smul.addr %s818, 8
        %s820 = scalar_lea.vmem %s0, %s819
        %p821 = pneg %p65
        %p822 = pneg %p62
        %p823 = pneg %p86
        %p824 = pneg %p83
        %p825 = pneg %p107
        %p826 = pneg %p104
        %p827 = pneg %p128
        %p828 = pneg %p125
        %p829 = pneg %p149
        %p830 = pneg %p146
        %p831 = pneg %p170
        %p832 = pneg %p167
        %p833 = pneg %p191
        %p834 = pneg %p188
        %p835 = pneg %p212
        %p836 = pneg %p209
        %p837 = pneg %p233
        %p838 = pneg %p230
        %p839 = pneg %p254
        %p840 = pneg %p251
        %p841 = pneg %p275
        %p842 = pneg %p272
        %p843 = pneg %p296
        %p844 = pneg %p293
        %p845 = pneg %p317
        %p846 = pneg %p314
        %p847 = pneg %p338
        %p848 = pneg %p335
        %p849 = pneg %p359
        %p850 = pneg %p356
        %p851 = pneg %p380
        %p852 = pneg %p377
        %p853 = pneg %p401
        %p854 = pneg %p398
        %p855 = pneg %p422
        %p856 = pneg %p419
        %p857 = pneg %p443
        %p858 = pneg %p440
        %p859 = pneg %p464
        %p860 = pneg %p461
        %p861 = pneg %p485
        %p862 = pneg %p482
        %p863 = pneg %p511
        %p864 = pneg %p508
        %s865 = sand.u32 %s498, 1
        %s866 = scalar_lea.sflag [#allocation7], %s865
        %s867 = sand.u32 %s498, 1
        %s868 = smul.addr %s867, 2
        %s869 = scalar_lea.vmem [#allocation26], %s868
        %p870 = pneg %p537
        %p871 = pneg %p534
        %p872 = scmp.lt.s32.totalorder %s44, 1
        %s873 = scalar_select %p872, %s44, 1
        %s874 = smul.addr %s873, 4
        %s875 = smul.addr %s874, 8
        %s876 = scalar_lea.vmem %s22, %s875
        %s877 = smul.u32 2, %s44
        %p878 = scmp.lt.s32.totalorder %s877, 3
        %s879 = scalar_select %p878, %s877, 3
        %s880 = smul.addr %s879, 8
        %s881 = scalar_lea.vmem %s0, %s880
        %s882 = smul.u32 2, %s44
        %p883 = scmp.lt.s32.totalorder %s44, 1
        %s884 = scalar_select %p883, %s44, 1
        %s885 = smul.addr %s884, 4
        %s886 = smul.addr %s885, 8
        %s887 = scalar_lea.vmem %s22, %s886
        %v889 = vld [vmem:[#allocation8] sm:$0xff]
        %v890 = vld [vmem:[#allocation10] sm:$0xff]
        %v891 = vld [vmem:[#allocation11] sm:$0xff]
        %v892 = vld [vmem:[#allocation5] sm:$0x1]
        %v893 = vld [vmem:[%s881] sm:$0xff]
        %v894 = vmul.f32 %v893, %v889
        %vm895 = vcmask 1047808
        %896 = vrot.lane.b32.xlu0 %v893, 32
        %v897 = vpop.permute.xlu0 %896
        %v898 = vsel %vm895, %v897, %v893
        %899 = vrot.lane.b32.xlu0 %v898, 32
        %v900 = vpop.permute.xlu0 %899
        %v901 = vsel %vm895, %v900, %v893
        %903 = vrot.lane.b32.xlu0 %v890, 1
        %v904 = vpop.permute.xlu0 %903
        %v906 = vmul.f32 %v901, %v904
        %908 = vrot.lane.b32.xlu0 %v906, 127
        %v909 = vpop.permute.xlu0 %908
        %v911 = vadd.f32 %v894, %v909
        %913 = vrot.lane.b32.xlu0 %v891, 31
        %v914 = vpop.permute.xlu0 %913
        %v916 = vmul.f32 %v901, %v914
        %918 = vrot.lane.b32.xlu0 %v916, 97
        %v919 = vpop.permute.xlu0 %918
        %v921 = vadd.f32 %v911, %v919
        %vm922 = vcmask 253952
        %923 = vst.msk [vmem:[#allocation2] sm:$0x1] %vm922, %v892
        %vm924 = vcmask 261120
        %925 = vst.msk [vmem:[#allocation2 + $0x1] sm:$0xff] %vm924, %v921
        %s926 = scalar_lea.vmem %s881, 8
        %v927 = vld [vmem:[%s926] sm:$0xff]
        %v928 = vmul.f32 %v927, %v889
        %929 = vrot.lane.b32.xlu0 %v927, 32
        %v930 = vpop.permute.xlu0 %929
        %v931 = vsel %vm895, %v930, %v927
        %932 = vrot.lane.b32.xlu0 %v931, 32
        %v933 = vpop.permute.xlu0 %932
        %v934 = vsel %vm895, %v933, %v927
        %v935 = vmul.f32 %v934, %v904
        %937 = vrot.lane.b32.xlu0 %v935, 127
        %v938 = vpop.permute.xlu0 %937
        %v940 = vadd.f32 %v928, %v938
        %v941 = vmul.f32 %v934, %v914
        %943 = vrot.lane.b32.xlu0 %v941, 97
        %v944 = vpop.permute.xlu0 %943
        %v946 = vadd.f32 %v940, %v944
        %947 = vst.msk [vmem:[#allocation2 + $0x9] sm:$0x1] %vm922, %v892
        %948 = vst.msk [vmem:[#allocation2 + $0xa] sm:$0xff] %vm924, %v946
        %v949 = vld [vmem:[#allocation2] sm:$0xff]
        %v950 = vld [vmem:[#allocation2 + $0x8] sm:$0xff]
        %v951 = vld [vmem:[#allocation2 + $0x10] sm:$0x3]
        %v952 = vpack.c.bf16 %v950, %v949
        %v953 = vpack.c.bf16 %v951, %v951
        %v954 = vld [vmem:[%s5] sm:$0xf]
        %v955 = vld [vmem:[%s5 + $0x4] sm:$0xf]
        %v956 = vld [vmem:[%s5 + $0x8] sm:$0xf]
        %v957 = vld [vmem:[%s5 + $0xc] sm:$0xf]
        %v958 = vld [vmem:[%s6] sm:$0x1]
        %v960 = vperm.slane %v958, 0
        %v966 = vunpack.c.l.b16 %v954
        %v967 = vunpack.c.l.b16 %v955
        %v968 = vunpack.c.l.b16 %v956
        %v969 = vunpack.c.l.b16 %v957
        %v970 = vpack.c.b16 %v967, %v966
        %v971 = vpack.c.b16 %v969, %v968
        %v975 = vsel %vm924, %v952, 0
        %v978 = vsel %vm924, %v953, 0
        %980 = vmatpush.bf16.msra.mxu0 0
        %981 = vmatpush.bf16.msra.mxu0 0
        %982 = vmatpush.bf16.msra.mxu0 0
        %983 = vmatpush.bf16.msra.mxu0 0
        %984 = vmatpush.bf16.msra.mxu0 0
        %985 = vmatpush.bf16.msra.mxu0 0
        %986 = vmatpush.bf16.msra.mxu0 %v971
        %987 = vmatpush.bf16.msra.mxu0 %v970
        %988 = vmatmul.bf16.gmra.mxu0 %v975
        %v989 = vpop.f32.mrf.mxu0
        %v990 = vadd.f32 %v960, %v989
        %v991 = vpop.f32.mrf.mxu0
        %v992 = vadd.f32 %v960, %v991
        %993 = vmatmul.bf16.gmra.mxu0 %v978
        %v994 = vpop.f32.mrf.mxu0
        %v995 = vadd.f32 %v960, %v994
        %v996 = vpop.f32.mrf.mxu0
        %997 = vdwg.mxu0
        %v998 = vpack.c.bf16 %v992, %v990
        %1000 = vrot.lane.b32.xlu0 %v998, 96
        %v1001 = vpop.permute.xlu0 %1000
        %vm1002 = vcmask 64512
        %v1004 = vsel %vm1002, %v998, 0
        %v1007 = vsel %vm1002, %v1001, 0
        %1009 = vmatpush.bf16.xpose.msra.mxu0 0
        %1010 = vmatpush.bf16.xpose.msra.mxu0 0
        %1011 = vmatpush.bf16.xpose.msra.mxu0 0
        %1012 = vmatpush.bf16.xpose.msra.mxu0 0
        %1013 = vmatpush.bf16.xpose.msra.mxu0 0
        %1014 = vmatpush.bf16.xpose.msra.mxu0 0
        %1015 = vmatpush.bf16.xpose.msra.mxu0 0
        %1016 = vmatpush.bf16.xpose.msra.mxu0 %v1007
        %1017 = vmatmul.bf16.gmra.mxu0 %v1004
        %v1018 = vpop.f32.mrf.mxu0
        %v1019 = vadd.f32 0.0, %v1018
        %v1020 = vpop.f32.mrf.mxu0
        %v1021 = vadd.f32 0.0, %v1020
        %1022 = vdwg.mxu0
        %vm1023 = vcmask 72704
        %v1024 = vsel %vm1023, %v1019, -inf
        %1025 = vmax.xlane.f32.xlu0 %v1024
        %v1026 = vpop.xlane.xlu0 %1025
        %vm1027 = vcmask 65536
        %v1028 = vsel %vm1027, %v1021, -inf
        %1029 = vmax.xlane.f32.xlu0 %v1028
        %v1030 = vpop.xlane.xlu0 %1029
        %v1031 = vsub.f32 %v1019, %v1026
        %v1032 = vsub.f32 %v1021, %v1030
        %v1033 = vmul.f32 %v1031, 1.442695
        %v1034 = vpow.pop %v1033
        %v1035 = vmul.f32 %v1032, 1.442695
        %v1036 = vpow.pop %v1035
        %v1037 = vsel %vm1023, %v1034, 0.0
        %1038 = vadd.xlane.f32.xlu0 %v1037
        %v1039 = vpop.xlane.xlu0 %1038
        %v1040 = vsel %vm1027, %v1036, 0.0
        %1041 = vadd.xlane.f32.xlu0 %v1040
        %v1042 = vpop.xlane.xlu0 %1041
        %v1043 = vrcp.pop %v1039
        %v1044 = vrcp.pop %v1042
        %v1045 = vmul.f32 %v1034, %v1043
        %v1046 = vmul.f32 %v1036, %v1044
        %v1047 = vpack.c.bf16 %v1046, %v1045
        %1048 = vrot.lane.b32.xlu0 %v998, 64
        %v1049 = vpop.permute.xlu0 %1048
        %v1051 = vsel %vm1023, %v1047, 0
        %vm1053 = vcmask 1043456
        %vm1054 = vcmask 1044480
        %v1055 = vsel %vm1053, 4294967295, 65535
        %v1056 = vsel %vm1054, %v1055, 0
        %v1058 = vand.u32 %v1049, %v1056
        %1060 = vmatpush.bf16.msra.mxu0 0
        %1061 = vmatpush.bf16.msra.mxu0 0
        %1062 = vmatpush.bf16.msra.mxu0 0
        %1063 = vmatpush.bf16.msra.mxu0 0
        %1064 = vmatpush.bf16.msra.mxu0 0
        %1065 = vmatpush.bf16.msra.mxu0 0
        %1066 = vmatpush.bf16.msra.mxu0 0
        %1067 = vmatpush.bf16.msra.mxu0 %v1058
        %1068 = vmatmul.bf16.gmra.mxu0 %v1051
        %v1069 = vpop.f32.mrf.mxu0
        %v1070 = vadd.f32 0.0, %v1069
        %v1071 = vpop.f32.mrf.mxu0
        %v1072 = vadd.f32 0.0, %v1071
        %1073 = vdwg.mxu0
        %1074 = vst.msk [vmem:[#allocation3] sm:$0xff] %vm1002, %v1070
        %vm1075 = vcmask 57344
        %1076 = vst.msk [vmem:[#allocation3 + $0x8] sm:$0x1] %vm1075, %v1072
        %1077 = vrot.lane.b32.xlu0 %v998, 120
        %v1078 = vpop.permute.xlu0 %1077
        %1079 = vrot.lane.b32.xlu0 %v998, 88
        %v1080 = vpop.permute.xlu0 %1079
        %v1082 = vsel %vm1002, %v1078, 0
        %v1085 = vsel %vm1002, %v1080, 0
        %1087 = vmatpush.bf16.xpose.msra.mxu0 0
        %1088 = vmatpush.bf16.xpose.msra.mxu0 0
        %1089 = vmatpush.bf16.xpose.msra.mxu0 0
        %1090 = vmatpush.bf16.xpose.msra.mxu0 0
        %1091 = vmatpush.bf16.xpose.msra.mxu0 0
        %1092 = vmatpush.bf16.xpose.msra.mxu0 0
        %1093 = vmatpush.bf16.xpose.msra.mxu0 0
        %1094 = vmatpush.bf16.xpose.msra.mxu0 %v1085
        %1095 = vmatmul.bf16.gmra.mxu0 %v1082
        %v1096 = vpop.f32.mrf.mxu0
        %v1097 = vadd.f32 0.0, %v1096
        %v1098 = vpop.f32.mrf.mxu0
        %v1099 = vadd.f32 0.0, %v1098
        %1100 = vdwg.mxu0
        %v1101 = vsel %vm1023, %v1097, -inf
        %1102 = vmax.xlane.f32.xlu0 %v1101
        %v1103 = vpop.xlane.xlu0 %1102
        %v1104 = vsel %vm1027, %v1099, -inf
        %1105 = vmax.xlane.f32.xlu0 %v1104
        %v1106 = vpop.xlane.xlu0 %1105
        %v1107 = vsub.f32 %v1097, %v1103
        %v1108 = vsub.f32 %v1099, %v1106
        %v1109 = vmul.f32 %v1107, 1.442695
        %v1110 = vpow.pop %v1109
        %v1111 = vmul.f32 %v1108, 1.442695
        %v1112 = vpow.pop %v1111
        %v1113 = vsel %vm1023, %v1110, 0.0
        %1114 = vadd.xlane.f32.xlu0 %v1113
        %v1115 = vpop.xlane.xlu0 %1114
        %v1116 = vsel %vm1027, %v1112, 0.0
        %1117 = vadd.xlane.f32.xlu0 %v1116
        %v1118 = vpop.xlane.xlu0 %1117
        %v1119 = vrcp.pop %v1115
        %v1120 = vrcp.pop %v1118
        %v1121 = vmul.f32 %v1110, %v1119
        %v1122 = vmul.f32 %v1112, %v1120
        %v1123 = vadd.f32 %v1045, %v1121
        %v1124 = vadd.f32 %v1046, %v1122
        %v1125 = vpack.c.bf16 %v1122, %v1121
        %1126 = vrot.lane.b32.xlu0 %v998, 56
        %v1127 = vpop.permute.xlu0 %1126
        %v1129 = vsel %vm1023, %v1125, 0
        %v1132 = vand.u32 %v1127, %v1056
        %1134 = vmatpush.bf16.msra.mxu0 0
        %1135 = vmatpush.bf16.msra.mxu0 0
        %1136 = vmatpush.bf16.msra.mxu0 0
        %1137 = vmatpush.bf16.msra.mxu0 0
        %1138 = vmatpush.bf16.msra.mxu0 0
        %1139 = vmatpush.bf16.msra.mxu0 0
        %1140 = vmatpush.bf16.msra.mxu0 0
        %1141 = vmatpush.bf16.msra.mxu0 %v1132
        %1142 = vmatmul.bf16.gmra.mxu0 %v1129
        %v1143 = vpop.f32.mrf.mxu0
        %v1144 = vadd.f32 0.0, %v1143
        %v1145 = vpop.f32.mrf.mxu0
        %v1146 = vadd.f32 0.0, %v1145
        %1147 = vdwg.mxu0
        %1150 = vrot.lane.b32.xlu0 %v1144, 8
        %v1151 = vpop.permute.xlu0 %1150
        %1152 = vrot.lane.b32.xlu0 %v1146, 8
        %v1153 = vpop.permute.xlu0 %1152
        %vm1156 = vcmask 130112
        %1157 = vst.msk [vmem:[#allocation3] sm:$0xff] %vm1156, %v1151
        %vm1158 = vcmask 122944
        %1159 = vst.msk [vmem:[#allocation3 + $0x8] sm:$0x1] %vm1158, %v1153
        %1160 = vrot.lane.b32.xlu0 %v998, 112
        %v1161 = vpop.permute.xlu0 %1160
        %1162 = vrot.lane.b32.xlu0 %v998, 80
        %v1163 = vpop.permute.xlu0 %1162
        %v1165 = vsel %vm1002, %v1161, 0
        %v1168 = vsel %vm1002, %v1163, 0
        %1170 = vmatpush.bf16.xpose.msra.mxu0 0
        %1171 = vmatpush.bf16.xpose.msra.mxu0 0
        %1172 = vmatpush.bf16.xpose.msra.mxu0 0
        %1173 = vmatpush.bf16.xpose.msra.mxu0 0
        %1174 = vmatpush.bf16.xpose.msra.mxu0 0
        %1175 = vmatpush.bf16.xpose.msra.mxu0 0
        %1176 = vmatpush.bf16.xpose.msra.mxu0 0
        %1177 = vmatpush.bf16.xpose.msra.mxu0 %v1168
        %1178 = vmatmul.bf16.gmra.mxu0 %v1165
        %v1179 = vpop.f32.mrf.mxu0
        %v1180 = vadd.f32 0.0, %v1179
        %v1181 = vpop.f32.mrf.mxu0
        %v1182 = vadd.f32 0.0, %v1181
        %1183 = vdwg.mxu0
        %v1184 = vsel %vm1023, %v1180, -inf
        %1185 = vmax.xlane.f32.xlu0 %v1184
        %v1186 = vpop.xlane.xlu0 %1185
        %v1187 = vsel %vm1027, %v1182, -inf
        %1188 = vmax.xlane.f32.xlu0 %v1187
        %v1189 = vpop.xlane.xlu0 %1188
        %v1190 = vsub.f32 %v1180, %v1186
        %v1191 = vsub.f32 %v1182, %v1189
        %v1192 = vmul.f32 %v1190, 1.442695
        %v1193 = vpow.pop %v1192
        %v1194 = vmul.f32 %v1191, 1.442695
        %v1195 = vpow.pop %v1194
        %v1196 = vsel %vm1023, %v1193, 0.0
        %1197 = vadd.xlane.f32.xlu0 %v1196
        %v1198 = vpop.xlane.xlu0 %1197
        %v1199 = vsel %vm1027, %v1195, 0.0
        %1200 = vadd.xlane.f32.xlu0 %v1199
        %v1201 = vpop.xlane.xlu0 %1200
        %v1202 = vrcp.pop %v1198
        %v1203 = vrcp.pop %v1201
        %v1204 = vmul.f32 %v1193, %v1202
        %v1205 = vmul.f32 %v1195, %v1203
        %v1206 = vadd.f32 %v1123, %v1204
        %v1207 = vadd.f32 %v1124, %v1205
        %v1208 = vpack.c.bf16 %v1205, %v1204
        %1209 = vrot.lane.b32.xlu0 %v998, 48
        %v1210 = vpop.permute.xlu0 %1209
        %v1212 = vsel %vm1023, %v1208, 0
        %v1215 = vand.u32 %v1210, %v1056
        %1217 = vmatpush.bf16.msra.mxu0 0
        %1218 = vmatpush.bf16.msra.mxu0 0
        %1219 = vmatpush.bf16.msra.mxu0 0
        %1220 = vmatpush.bf16.msra.mxu0 0
        %1221 = vmatpush.bf16.msra.mxu0 0
        %1222 = vmatpush.bf16.msra.mxu0 0
        %1223 = vmatpush.bf16.msra.mxu0 0
        %1224 = vmatpush.bf16.msra.mxu0 %v1215
        %1225 = vmatmul.bf16.gmra.mxu0 %v1212
        %v1226 = vpop.f32.mrf.mxu0
        %v1227 = vadd.f32 0.0, %v1226
        %v1228 = vpop.f32.mrf.mxu0
        %v1229 = vadd.f32 0.0, %v1228
        %1230 = vdwg.mxu0
        %1233 = vrot.lane.b32.xlu0 %v1227, 16
        %v1234 = vpop.permute.xlu0 %1233
        %1235 = vrot.lane.b32.xlu0 %v1229, 16
        %v1236 = vpop.permute.xlu0 %1235
        %vm1239 = vcmask 195712
        %1240 = vst.msk [vmem:[#allocation3] sm:$0xff] %vm1239, %v1234
        %vm1241 = vcmask 188544
        %1242 = vst.msk [vmem:[#allocation3 + $0x8] sm:$0x1] %vm1241, %v1236
        %1243 = vrot.lane.b32.xlu0 %v998, 104
        %v1244 = vpop.permute.xlu0 %1243
        %1245 = vrot.lane.b32.xlu0 %v998, 72
        %v1246 = vpop.permute.xlu0 %1245
        %v1248 = vsel %vm1002, %v1244, 0
        %v1251 = vsel %vm1002, %v1246, 0
        %1253 = vmatpush.bf16.xpose.msra.mxu0 0
        %1254 = vmatpush.bf16.xpose.msra.mxu0 0
        %1255 = vmatpush.bf16.xpose.msra.mxu0 0
        %1256 = vmatpush.bf16.xpose.msra.mxu0 0
        %1257 = vmatpush.bf16.xpose.msra.mxu0 0
        %1258 = vmatpush.bf16.xpose.msra.mxu0 0
        %1259 = vmatpush.bf16.xpose.msra.mxu0 0
        %1260 = vmatpush.bf16.xpose.msra.mxu0 %v1251
        %1261 = vmatmul.bf16.gmra.mxu0 %v1248
        %v1262 = vpop.f32.mrf.mxu0
        %v1263 = vadd.f32 0.0, %v1262
        %v1264 = vpop.f32.mrf.mxu0
        %v1265 = vadd.f32 0.0, %v1264
        %1266 = vdwg.mxu0
        %v1267 = vsel %vm1023, %v1263, -inf
        %1268 = vmax.xlane.f32.xlu0 %v1267
        %v1269 = vpop.xlane.xlu0 %1268
        %v1270 = vsel %vm1027, %v1265, -inf
        %1271 = vmax.xlane.f32.xlu0 %v1270
        %v1272 = vpop.xlane.xlu0 %1271
        %v1273 = vsub.f32 %v1263, %v1269
        %v1274 = vsub.f32 %v1265, %v1272
        %v1275 = vmul.f32 %v1273, 1.442695
        %v1276 = vpow.pop %v1275
        %v1277 = vmul.f32 %v1274, 1.442695
        %v1278 = vpow.pop %v1277
        %v1279 = vsel %vm1023, %v1276, 0.0
        %1280 = vadd.xlane.f32.xlu0 %v1279
        %v1281 = vpop.xlane.xlu0 %1280
        %v1282 = vsel %vm1027, %v1278, 0.0
        %1283 = vadd.xlane.f32.xlu0 %v1282
        %v1284 = vpop.xlane.xlu0 %1283
        %v1285 = vrcp.pop %v1281
        %v1286 = vrcp.pop %v1284
        %v1287 = vmul.f32 %v1276, %v1285
        %v1288 = vmul.f32 %v1278, %v1286
        %v1289 = vadd.f32 %v1206, %v1287
        %v1290 = vadd.f32 %v1207, %v1288
        %v1291 = vpack.c.bf16 %v1288, %v1287
        %1292 = vrot.lane.b32.xlu0 %v998, 40
        %v1293 = vpop.permute.xlu0 %1292
        %v1295 = vsel %vm1023, %v1291, 0
        %v1298 = vand.u32 %v1293, %v1056
        %1300 = vmatpush.bf16.msra.mxu0 0
        %1301 = vmatpush.bf16.msra.mxu0 0
        %1302 = vmatpush.bf16.msra.mxu0 0
        %1303 = vmatpush.bf16.msra.mxu0 0
        %1304 = vmatpush.bf16.msra.mxu0 0
        %1305 = vmatpush.bf16.msra.mxu0 0
        %1306 = vmatpush.bf16.msra.mxu0 0
        %1307 = vmatpush.bf16.msra.mxu0 %v1298
        %1308 = vmatmul.bf16.gmra.mxu0 %v1295
        %v1309 = vpop.f32.mrf.mxu0
        %v1310 = vadd.f32 0.0, %v1309
        %v1311 = vpop.f32.mrf.mxu0
        %v1312 = vadd.f32 0.0, %v1311
        %1313 = vdwg.mxu0
        %1316 = vrot.lane.b32.xlu0 %v1310, 24
        %v1317 = vpop.permute.xlu0 %1316
        %1318 = vrot.lane.b32.xlu0 %v1312, 24
        %v1319 = vpop.permute.xlu0 %1318
        %vm1322 = vcmask 261312
        %1323 = vst.msk [vmem:[#allocation3] sm:$0xff] %vm1322, %v1317
        %vm1324 = vcmask 254144
        %1325 = vst.msk [vmem:[#allocation3 + $0x8] sm:$0x1] %vm1324, %v1319
        %v1326 = vmul.f32 %v1289, 0.25
        %v1327 = vmul.f32 %v1290, 0.25
        %1328 = vst.msk [vmem:[%s887] sm:$0xff] %vm1023, %v1326
        %1329 = vst.msk [vmem:[%s887 + $0x8] sm:$0x1] %vm1027, %v1327
        %v1330 = vpack.c.bf16 %v995, %v992
        %v1332 = vshrl.u32 %v1330, 16
        %v1334 = vshll.u32 %v1330, 16
        %v1336 = vrot.slane %v1334, 1
        %v1337 = vor.u32 %v1332, %v1336
        %1338 = vrot.lane.b32.xlu0 %v1337, 96
        %v1339 = vpop.permute.xlu0 %1338
        %v1341 = vsel %vm1002, %v1337, 0
        %v1344 = vsel %vm1002, %v1339, 0
        %1346 = vmatpush.bf16.xpose.msra.mxu0 0
        %1347 = vmatpush.bf16.xpose.msra.mxu0 0
        %1348 = vmatpush.bf16.xpose.msra.mxu0 0
        %1349 = vmatpush.bf16.xpose.msra.mxu0 0
        %1350 = vmatpush.bf16.xpose.msra.mxu0 0
        %1351 = vmatpush.bf16.xpose.msra.mxu0 0
        %1352 = vmatpush.bf16.xpose.msra.mxu0 0
        %1353 = vmatpush.bf16.xpose.msra.mxu0 %v1344
        %1354 = vmatmul.bf16.gmra.mxu0 %v1341
        %v1355 = vpop.f32.mrf.mxu0
        %v1356 = vadd.f32 0.0, %v1355
        %v1357 = vpop.f32.mrf.mxu0
        %v1358 = vadd.f32 0.0, %v1357
        %1359 = vdwg.mxu0
        %v1360 = vsel %vm1023, %v1356, -inf
        %1361 = vmax.xlane.f32.xlu0 %v1360
        %v1362 = vpop.xlane.xlu0 %1361
        %v1363 = vsel %vm1027, %v1358, -inf
        %1364 = vmax.xlane.f32.xlu0 %v1363
        %v1365 = vpop.xlane.xlu0 %1364
        %v1366 = vsub.f32 %v1356, %v1362
        %v1367 = vsub.f32 %v1358, %v1365
        %v1368 = vmul.f32 %v1366, 1.442695
        %v1369 = vpow.pop %v1368
        %v1370 = vmul.f32 %v1367, 1.442695
        %v1371 = vpow.pop %v1370
        %v1372 = vsel %vm1023, %v1369, 0.0
        %1373 = vadd.xlane.f32.xlu0 %v1372
        %v1374 = vpop.xlane.xlu0 %1373
        %v1375 = vsel %vm1027, %v1371, 0.0
        %1376 = vadd.xlane.f32.xlu0 %v1375
        %v1377 = vpop.xlane.xlu0 %1376
        %v1378 = vrcp.pop %v1374
        %v1379 = vrcp.pop %v1377
        %v1380 = vmul.f32 %v1369, %v1378
        %v1381 = vmul.f32 %v1371, %v1379
        %v1382 = vpack.c.bf16 %v1381, %v1380
        %1383 = vrot.lane.b32.xlu0 %v1337, 64
        %v1384 = vpop.permute.xlu0 %1383
        %v1386 = vsel %vm1023, %v1382, 0
        %v1389 = vand.u32 %v1384, %v1056
        %1391 = vmatpush.bf16.msra.mxu0 0
        %1392 = vmatpush.bf16.msra.mxu0 0
        %1393 = vmatpush.bf16.msra.mxu0 0
        %1394 = vmatpush.bf16.msra.mxu0 0
        %1395 = vmatpush.bf16.msra.mxu0 0
        %1396 = vmatpush.bf16.msra.mxu0 0
        %1397 = vmatpush.bf16.msra.mxu0 0
        %1398 = vmatpush.bf16.msra.mxu0 %v1389
        %1399 = vmatmul.bf16.gmra.mxu0 %v1386
        %v1400 = vpop.f32.mrf.mxu0
        %v1401 = vadd.f32 0.0, %v1400
        %v1402 = vpop.f32.mrf.mxu0
        %v1403 = vadd.f32 0.0, %v1402
        %1404 = vdwg.mxu0
        %1405 = vst.msk [vmem:[#allocation3 + $0x9] sm:$0xff] %vm1002, %v1401
        %1406 = vst.msk [vmem:[#allocation3 + $0x11] sm:$0x1] %vm1075, %v1403
        %1407 = vrot.lane.b32.xlu0 %v1337, 120
        %v1408 = vpop.permute.xlu0 %1407
        %1409 = vrot.lane.b32.xlu0 %v1337, 88
        %v1410 = vpop.permute.xlu0 %1409
        %v1412 = vsel %vm1002, %v1408, 0
        %v1415 = vsel %vm1002, %v1410, 0
        %1417 = vmatpush.bf16.xpose.msra.mxu0 0
        %1418 = vmatpush.bf16.xpose.msra.mxu0 0
        %1419 = vmatpush.bf16.xpose.msra.mxu0 0
        %1420 = vmatpush.bf16.xpose.msra.mxu0 0
        %1421 = vmatpush.bf16.xpose.msra.mxu0 0
        %1422 = vmatpush.bf16.xpose.msra.mxu0 0
        %1423 = vmatpush.bf16.xpose.msra.mxu0 0
        %1424 = vmatpush.bf16.xpose.msra.mxu0 %v1415
        %1425 = vmatmul.bf16.gmra.mxu0 %v1412
        %v1426 = vpop.f32.mrf.mxu0
        %v1427 = vadd.f32 0.0, %v1426
        %v1428 = vpop.f32.mrf.mxu0
        %v1429 = vadd.f32 0.0, %v1428
        %1430 = vdwg.mxu0
        %v1431 = vsel %vm1023, %v1427, -inf
        %1432 = vmax.xlane.f32.xlu0 %v1431
        %v1433 = vpop.xlane.xlu0 %1432
        %v1434 = vsel %vm1027, %v1429, -inf
        %1435 = vmax.xlane.f32.xlu0 %v1434
        %v1436 = vpop.xlane.xlu0 %1435
        %v1437 = vsub.f32 %v1427, %v1433
        %v1438 = vsub.f32 %v1429, %v1436
        %v1439 = vmul.f32 %v1437, 1.442695
        %v1440 = vpow.pop %v1439
        %v1441 = vmul.f32 %v1438, 1.442695
        %v1442 = vpow.pop %v1441
        %v1443 = vsel %vm1023, %v1440, 0.0
        %1444 = vadd.xlane.f32.xlu0 %v1443
        %v1445 = vpop.xlane.xlu0 %1444
        %v1446 = vsel %vm1027, %v1442, 0.0
        %1447 = vadd.xlane.f32.xlu0 %v1446
        %v1448 = vpop.xlane.xlu0 %1447
        %v1449 = vrcp.pop %v1445
        %v1450 = vrcp.pop %v1448
        %v1451 = vmul.f32 %v1440, %v1449
        %v1452 = vmul.f32 %v1442, %v1450
        %v1453 = vadd.f32 %v1380, %v1451
        %v1454 = vadd.f32 %v1381, %v1452
        %v1455 = vpack.c.bf16 %v1452, %v1451
        %1456 = vrot.lane.b32.xlu0 %v1337, 56
        %v1457 = vpop.permute.xlu0 %1456
        %v1459 = vsel %vm1023, %v1455, 0
        %v1462 = vand.u32 %v1457, %v1056
        %1464 = vmatpush.bf16.msra.mxu0 0
        %1465 = vmatpush.bf16.msra.mxu0 0
        %1466 = vmatpush.bf16.msra.mxu0 0
        %1467 = vmatpush.bf16.msra.mxu0 0
        %1468 = vmatpush.bf16.msra.mxu0 0
        %1469 = vmatpush.bf16.msra.mxu0 0
        %1470 = vmatpush.bf16.msra.mxu0 0
        %1471 = vmatpush.bf16.msra.mxu0 %v1462
        %1472 = vmatmul.bf16.gmra.mxu0 %v1459
        %v1473 = vpop.f32.mrf.mxu0
        %v1474 = vadd.f32 0.0, %v1473
        %v1475 = vpop.f32.mrf.mxu0
        %v1476 = vadd.f32 0.0, %v1475
        %1477 = vdwg.mxu0
        %1480 = vrot.lane.b32.xlu0 %v1474, 8
        %v1481 = vpop.permute.xlu0 %1480
        %1482 = vrot.lane.b32.xlu0 %v1476, 8
        %v1483 = vpop.permute.xlu0 %1482
        %1486 = vst.msk [vmem:[#allocation3 + $0x9] sm:$0xff] %vm1156, %v1481
        %1487 = vst.msk [vmem:[#allocation3 + $0x11] sm:$0x1] %vm1158, %v1483
        %1488 = vrot.lane.b32.xlu0 %v1337, 112
        %v1489 = vpop.permute.xlu0 %1488
        %1490 = vrot.lane.b32.xlu0 %v1337, 80
        %v1491 = vpop.permute.xlu0 %1490
        %v1493 = vsel %vm1002, %v1489, 0
        %v1496 = vsel %vm1002, %v1491, 0
        %1498 = vmatpush.bf16.xpose.msra.mxu0 0
        %1499 = vmatpush.bf16.xpose.msra.mxu0 0
        %1500 = vmatpush.bf16.xpose.msra.mxu0 0
        %1501 = vmatpush.bf16.xpose.msra.mxu0 0
        %1502 = vmatpush.bf16.xpose.msra.mxu0 0
        %1503 = vmatpush.bf16.xpose.msra.mxu0 0
        %1504 = vmatpush.bf16.xpose.msra.mxu0 0
        %1505 = vmatpush.bf16.xpose.msra.mxu0 %v1496
        %1506 = vmatmul.bf16.gmra.mxu0 %v1493
        %v1507 = vpop.f32.mrf.mxu0
        %v1508 = vadd.f32 0.0, %v1507
        %v1509 = vpop.f32.mrf.mxu0
        %v1510 = vadd.f32 0.0, %v1509
        %1511 = vdwg.mxu0
        %v1512 = vsel %vm1023, %v1508, -inf
        %1513 = vmax.xlane.f32.xlu0 %v1512
        %v1514 = vpop.xlane.xlu0 %1513
        %v1515 = vsel %vm1027, %v1510, -inf
        %1516 = vmax.xlane.f32.xlu0 %v1515
        %v1517 = vpop.xlane.xlu0 %1516
        %v1518 = vsub.f32 %v1508, %v1514
        %v1519 = vsub.f32 %v1510, %v1517
        %v1520 = vmul.f32 %v1518, 1.442695
        %v1521 = vpow.pop %v1520
        %v1522 = vmul.f32 %v1519, 1.442695
        %v1523 = vpow.pop %v1522
        %v1524 = vsel %vm1023, %v1521, 0.0
        %1525 = vadd.xlane.f32.xlu0 %v1524
        %v1526 = vpop.xlane.xlu0 %1525
        %v1527 = vsel %vm1027, %v1523, 0.0
        %1528 = vadd.xlane.f32.xlu0 %v1527
        %v1529 = vpop.xlane.xlu0 %1528
        %v1530 = vrcp.pop %v1526
        %v1531 = vrcp.pop %v1529
        %v1532 = vmul.f32 %v1521, %v1530
        %v1533 = vmul.f32 %v1523, %v1531
        %v1534 = vadd.f32 %v1453, %v1532
        %v1535 = vadd.f32 %v1454, %v1533
        %v1536 = vpack.c.bf16 %v1533, %v1532
        %1537 = vrot.lane.b32.xlu0 %v1337, 48
        %v1538 = vpop.permute.xlu0 %1537
        %v1540 = vsel %vm1023, %v1536, 0
        %v1543 = vand.u32 %v1538, %v1056
        %1545 = vmatpush.bf16.msra.mxu0 0
        %1546 = vmatpush.bf16.msra.mxu0 0
        %1547 = vmatpush.bf16.msra.mxu0 0
        %1548 = vmatpush.bf16.msra.mxu0 0
        %1549 = vmatpush.bf16.msra.mxu0 0
        %1550 = vmatpush.bf16.msra.mxu0 0
        %1551 = vmatpush.bf16.msra.mxu0 0
        %1552 = vmatpush.bf16.msra.mxu0 %v1543
        %1553 = vmatmul.bf16.gmra.mxu0 %v1540
        %v1554 = vpop.f32.mrf.mxu0
        %v1555 = vadd.f32 0.0, %v1554
        %v1556 = vpop.f32.mrf.mxu0
        %v1557 = vadd.f32 0.0, %v1556
        %1558 = vdwg.mxu0
        %1561 = vrot.lane.b32.xlu0 %v1555, 16
        %v1562 = vpop.permute.xlu0 %1561
        %1563 = vrot.lane.b32.xlu0 %v1557, 16
        %v1564 = vpop.permute.xlu0 %1563
        %1567 = vst.msk [vmem:[#allocation3 + $0x9] sm:$0xff] %vm1239, %v1562
        %1568 = vst.msk [vmem:[#allocation3 + $0x11] sm:$0x1] %vm1241, %v1564
        %1569 = vrot.lane.b32.xlu0 %v1337, 104
        %v1570 = vpop.permute.xlu0 %1569
        %1571 = vrot.lane.b32.xlu0 %v1337, 72
        %v1572 = vpop.permute.xlu0 %1571
        %v1574 = vsel %vm1002, %v1570, 0
        %v1577 = vsel %vm1002, %v1572, 0
        %1579 = vmatpush.bf16.xpose.msra.mxu0 0
        %1580 = vmatpush.bf16.xpose.msra.mxu0 0
        %1581 = vmatpush.bf16.xpose.msra.mxu0 0
        %1582 = vmatpush.bf16.xpose.msra.mxu0 0
        %1583 = vmatpush.bf16.xpose.msra.mxu0 0
        %1584 = vmatpush.bf16.xpose.msra.mxu0 0
        %1585 = vmatpush.bf16.xpose.msra.mxu0 0
        %1586 = vmatpush.bf16.xpose.msra.mxu0 %v1577
        %1587 = vmatmul.bf16.gmra.mxu0 %v1574
        %v1588 = vpop.f32.mrf.mxu0
        %v1589 = vadd.f32 0.0, %v1588
        %v1590 = vpop.f32.mrf.mxu0
        %v1591 = vadd.f32 0.0, %v1590
        %1592 = vdwg.mxu0
        %v1593 = vsel %vm1023, %v1589, -inf
        %1594 = vmax.xlane.f32.xlu0 %v1593
        %v1595 = vpop.xlane.xlu0 %1594
        %v1596 = vsel %vm1027, %v1591, -inf
        %1597 = vmax.xlane.f32.xlu0 %v1596
        %v1598 = vpop.xlane.xlu0 %1597
        %v1599 = vsub.f32 %v1589, %v1595
        %v1600 = vsub.f32 %v1591, %v1598
        %v1601 = vmul.f32 %v1599, 1.442695
        %v1602 = vpow.pop %v1601
        %v1603 = vmul.f32 %v1600, 1.442695
        %v1604 = vpow.pop %v1603
        %v1605 = vsel %vm1023, %v1602, 0.0
        %1606 = vadd.xlane.f32.xlu0 %v1605
        %v1607 = vpop.xlane.xlu0 %1606
        %v1608 = vsel %vm1027, %v1604, 0.0
        %1609 = vadd.xlane.f32.xlu0 %v1608
        %v1610 = vpop.xlane.xlu0 %1609
        %v1611 = vrcp.pop %v1607
        %v1612 = vrcp.pop %v1610
        %v1613 = vmul.f32 %v1602, %v1611
        %v1614 = vmul.f32 %v1604, %v1612
        %v1615 = vadd.f32 %v1534, %v1613
        %v1616 = vadd.f32 %v1535, %v1614
        %v1617 = vpack.c.bf16 %v1614, %v1613
        %1618 = vrot.lane.b32.xlu0 %v1337, 40
        %v1619 = vpop.permute.xlu0 %1618
        %v1621 = vsel %vm1023, %v1617, 0
        %v1624 = vand.u32 %v1619, %v1056
        %1626 = vmatpush.bf16.msra.mxu0 0
        %1627 = vmatpush.bf16.msra.mxu0 0
        %1628 = vmatpush.bf16.msra.mxu0 0
        %1629 = vmatpush.bf16.msra.mxu0 0
        %1630 = vmatpush.bf16.msra.mxu0 0
        %1631 = vmatpush.bf16.msra.mxu0 0
        %1632 = vmatpush.bf16.msra.mxu0 0
        %1633 = vmatpush.bf16.msra.mxu0 %v1624
        %1634 = vmatmul.bf16.gmra.mxu0 %v1621
        %v1635 = vpop.f32.mrf.mxu0
        %v1636 = vadd.f32 0.0, %v1635
        %v1637 = vpop.f32.mrf.mxu0
        %v1638 = vadd.f32 0.0, %v1637
        %1639 = vdwg.mxu0
        %1642 = vrot.lane.b32.xlu0 %v1636, 24
        %v1643 = vpop.permute.xlu0 %1642
        %1644 = vrot.lane.b32.xlu0 %v1638, 24
        %v1645 = vpop.permute.xlu0 %1644
        %1648 = vst.msk [vmem:[#allocation3 + $0x9] sm:$0xff] %vm1322, %v1643
        %1649 = vst.msk [vmem:[#allocation3 + $0x11] sm:$0x1] %vm1324, %v1645
        %v1650 = vmul.f32 %v1615, 0.25
        %v1651 = vmul.f32 %v1616, 0.25
        %s1652 = scalar_lea.vmem %s887, 16
        %1653 = vst.msk [vmem:[%s1652] sm:$0xff] %vm1023, %v1650
        %1654 = vst.msk [vmem:[%s1652 + $0x8] sm:$0x1] %vm1027, %v1651
        %v1655 = vld [vmem:[#allocation3] sm:$0xff]
        %v1656 = vld [vmem:[#allocation3 + $0x8] sm:$0xff]
        %v1657 = vld [vmem:[#allocation3 + $0x10] sm:$0x3]
        %v1658 = vpack.c.bf16 %v1656, %v1655
        %v1659 = vpack.c.bf16 %v1657, %v1657
        %v1660 = vld [vmem:[%s7] sm:$0xf]
        %v1661 = vld [vmem:[%s7 + $0x4] sm:$0xf]
        %v1662 = vld [vmem:[%s7 + $0x8] sm:$0xf]
        %v1663 = vld [vmem:[%s7 + $0xc] sm:$0xf]
        %v1664 = vld [vmem:[#allocation13] sm:$0x1]
        %v1666 = vperm.slane %v1664, 0
        %v1672 = vunpack.c.l.b16 %v1660
        %v1673 = vunpack.c.l.b16 %v1661
        %v1674 = vunpack.c.l.b16 %v1662
        %v1675 = vunpack.c.l.b16 %v1663
        %v1676 = vpack.c.b16 %v1673, %v1672
        %v1677 = vpack.c.b16 %v1675, %v1674
        %v1681 = vsel %vm924, %v1658, 0
        %v1684 = vsel %vm924, %v1659, 0
        %1686 = vmatpush.bf16.msra.mxu0 0
        %1687 = vmatpush.bf16.msra.mxu0 0
        %1688 = vmatpush.bf16.msra.mxu0 0
        %1689 = vmatpush.bf16.msra.mxu0 0
        %1690 = vmatpush.bf16.msra.mxu0 0
        %1691 = vmatpush.bf16.msra.mxu0 0
        %1692 = vmatpush.bf16.msra.mxu0 %v1677
        %1693 = vmatpush.bf16.msra.mxu0 %v1676
        %1694 = vmatmul.bf16.gmra.mxu0 %v1681
        %v1695 = vpop.f32.mrf.mxu0
        %v1696 = vadd.f32 %v1666, %v1695
        %v1697 = vpop.f32.mrf.mxu0
        %v1698 = vadd.f32 %v1666, %v1697
        %1699 = vmatmul.bf16.gmra.mxu0 %v1684
        %v1700 = vpop.f32.mrf.mxu0
        %v1701 = vadd.f32 %v1666, %v1700
        %v1702 = vpop.f32.mrf.mxu0
        %1703 = vdwg.mxu0
        %v1704 = vadd.f32 %v949, %v1696
        %v1705 = vadd.f32 %v950, %v1698
        %v1706 = vadd.f32 %v951, %v1701
        %v1707 = vld [vmem:[#allocation14] sm:$0x1]
        %v1708 = vld [vmem:[#allocation16] sm:$0x1]
        %v1709 = vsel %vm924, %v1704, 0.0
        %1710 = vadd.xlane.f32.xlu0 %v1709
        %v1711 = vpop.xlane.xlu0 %1710
        %v1712 = vsel %vm924, %v1705, 0.0
        %1713 = vadd.xlane.f32.xlu0 %v1712
        %v1714 = vpop.xlane.xlu0 %1713
        %vm1715 = vcmask 254976
        %v1716 = vsel %vm1715, %v1706, 0.0
        %1717 = vadd.xlane.f32.xlu0 %v1716
        %v1718 = vpop.xlane.xlu0 %1717
        %v1719 = vrcp.pop 32.0
        %v1720 = vmul.f32 32.0, %v1719
        %v1721 = vsub.f32 1.0, %v1720
        %v1722 = vmul.f32 %v1719, %v1721
        %v1723 = vadd.f32 %v1719, %v1722
        %vm1724 = vweird.f32 %v1719
        %v1725 = vsel %vm1724, %v1719, %v1723
        %v1726 = vmul.f32 %v1711, %v1725
        %v1727 = vmul.f32 %v1714, %v1725
        %v1728 = vmul.f32 %v1718, %v1725
        %v1729 = vsub.f32 %v1704, %v1726
        %v1730 = vsub.f32 %v1705, %v1727
        %v1731 = vsub.f32 %v1706, %v1728
        %v1732 = vmul.f32 %v1729, %v1729
        %v1733 = vmul.f32 %v1730, %v1730
        %v1734 = vmul.f32 %v1731, %v1731
        %v1735 = vsel %vm924, %v1732, 0.0
        %1736 = vadd.xlane.f32.xlu0 %v1735
        %v1737 = vpop.xlane.xlu0 %1736
        %v1738 = vsel %vm924, %v1733, 0.0
        %1739 = vadd.xlane.f32.xlu0 %v1738
        %v1740 = vpop.xlane.xlu0 %1739
        %v1741 = vsel %vm1715, %v1734, 0.0
        %1742 = vadd.xlane.f32.xlu0 %v1741
        %v1743 = vpop.xlane.xlu0 %1742
        %v1744 = vmul.f32 %v1737, %v1725
        %v1745 = vmul.f32 %v1740, %v1725
        %v1746 = vmul.f32 %v1743, %v1725
        %v1747 = vadd.f32 %v1744, 1e-05
        %v1748 = vadd.f32 %v1745, 1e-05
        %v1749 = vadd.f32 %v1746, 1e-05
        %v1750 = vrsqrt.pop %v1747
        %v1751 = vmul.f32 %v1750, %v1747
        %v1752 = vmul.f32 %v1751, %v1750
        %v1753 = vmul.f32 0.5, %v1752
        %v1754 = vsub.f32 1.5, %v1753
        %v1755 = vmul.f32 %v1750, %v1754
        %vm1756 = vweird.f32 %v1747
        %vm1757 = vweird.f32 %v1750
        %vm1758 = vmor %vm1756, %vm1757
        %v1759 = vsel %vm1758, %v1750, %v1755
        %v1760 = vrsqrt.pop %v1748
        %v1761 = vmul.f32 %v1760, %v1748
        %v1762 = vmul.f32 %v1761, %v1760
        %v1763 = vmul.f32 0.5, %v1762
        %v1764 = vsub.f32 1.5, %v1763
        %v1765 = vmul.f32 %v1760, %v1764
        %vm1766 = vweird.f32 %v1748
        %vm1767 = vweird.f32 %v1760
        %vm1768 = vmor %vm1766, %vm1767
        %v1769 = vsel %vm1768, %v1760, %v1765
        %v1770 = vrsqrt.pop %v1749
        %v1771 = vmul.f32 %v1770, %v1749
        %v1772 = vmul.f32 %v1771, %v1770
        %v1773 = vmul.f32 0.5, %v1772
        %v1774 = vsub.f32 1.5, %v1773
        %v1775 = vmul.f32 %v1770, %v1774
        %vm1776 = vweird.f32 %v1749
        %vm1777 = vweird.f32 %v1770
        %vm1778 = vmor %vm1776, %vm1777
        %v1779 = vsel %vm1778, %v1770, %v1775
        %v1780 = vmul.f32 %v1729, %v1759
        %v1781 = vmul.f32 %v1730, %v1769
        %v1782 = vmul.f32 %v1731, %v1779
        %v1784 = vperm.slane %v1707, 0
        %v1786 = vmul.f32 %v1780, %v1784
        %v1787 = vmul.f32 %v1781, %v1784
        %v1788 = vmul.f32 %v1782, %v1784
        %v1790 = vperm.slane %v1708, 0
        %v1792 = vadd.f32 %v1786, %v1790
        %v1793 = vadd.f32 %v1787, %v1790
        %v1794 = vadd.f32 %v1788, %v1790
        %v1795 = vpack.c.bf16 %v1793, %v1792
        %v1796 = vpack.c.bf16 %v1794, %v1794
        %v1797 = vld [vmem:[%s11] sm:$0xf]
        %v1798 = vld [vmem:[%s11 + $0x4] sm:$0xf]
        %v1799 = vld [vmem:[%s11 + $0x8] sm:$0xf]
        %v1800 = vld [vmem:[%s11 + $0xc] sm:$0xf]
        %v1801 = vld [vmem:[#allocation17] sm:$0x1]
        %v1803 = vperm.slane %v1801, 0
        %v1809 = vunpack.c.l.b16 %v1797
        %v1810 = vunpack.c.l.b16 %v1798
        %v1811 = vunpack.c.l.b16 %v1799
        %v1812 = vunpack.c.l.b16 %v1800
        %v1813 = vpack.c.b16 %v1810, %v1809
        %v1814 = vpack.c.b16 %v1812, %v1811
        %v1818 = vsel %vm924, %v1795, 0
        %v1821 = vsel %vm924, %v1796, 0
        %1823 = vmatpush.bf16.msra.mxu0 0
        %1824 = vmatpush.bf16.msra.mxu0 0
        %1825 = vmatpush.bf16.msra.mxu0 0
        %1826 = vmatpush.bf16.msra.mxu0 0
        %1827 = vmatpush.bf16.msra.mxu0 0
        %1828 = vmatpush.bf16.msra.mxu0 0
        %1829 = vmatpush.bf16.msra.mxu0 %v1814
        %1830 = vmatpush.bf16.msra.mxu0 %v1813
        %1831 = vmatmul.bf16.gmra.mxu0 %v1818
        %v1832 = vpop.f32.mrf.mxu0
        %v1833 = vadd.f32 %v1803, %v1832
        %v1834 = vpop.f32.mrf.mxu0
        %v1835 = vadd.f32 %v1803, %v1834
        %1836 = vmatmul.bf16.gmra.mxu0 %v1821
        %v1837 = vpop.f32.mrf.mxu0
        %v1838 = vadd.f32 %v1803, %v1837
        %v1839 = vpop.f32.mrf.mxu0
        %1840 = vdwg.mxu0
        %v1841 = vmul.f32 %v1833, %v1833
        %v1842 = vmul.f32 %v1835, %v1835
        %v1843 = vmul.f32 %v1838, %v1838
        %v1844 = vmul.f32 %v1833, %v1841
        %v1845 = vmul.f32 %v1835, %v1842
        %v1846 = vmul.f32 %v1838, %v1843
        %v1847 = vmul.f32 %v1844, 0.044715
        %v1848 = vmul.f32 %v1845, 0.044715
        %v1849 = vmul.f32 %v1846, 0.044715
        %v1850 = vadd.f32 %v1833, %v1847
        %v1851 = vadd.f32 %v1835, %v1848
        %v1852 = vadd.f32 %v1838, %v1849
        %v1853 = vmul.f32 %v1850, 0.7978846
        %v1854 = vmul.f32 %v1851, 0.7978846
        %v1855 = vmul.f32 %v1852, 0.7978846
        %v1856 = vtanh.pop %v1853
        %v1857 = vtanh.pop %v1854
        %v1858 = vtanh.pop %v1855
        %v1859 = vadd.f32 %v1856, 1.0
        %v1860 = vadd.f32 %v1857, 1.0
        %v1861 = vadd.f32 %v1858, 1.0
        %v1862 = vmul.f32 %v1859, 0.5
        %v1863 = vmul.f32 %v1860, 0.5
        %v1864 = vmul.f32 %v1861, 0.5
        %v1865 = vmul.f32 %v1833, %v1862
        %v1866 = vmul.f32 %v1835, %v1863
        %v1867 = vmul.f32 %v1838, %v1864
        %v1868 = vpack.c.bf16 %v1866, %v1865
        %v1869 = vpack.c.bf16 %v1867, %v1867
        %v1870 = vld [vmem:[%s13] sm:$0xf]
        %v1871 = vld [vmem:[%s13 + $0x4] sm:$0xf]
        %v1872 = vld [vmem:[%s13 + $0x8] sm:$0xf]
        %v1873 = vld [vmem:[%s13 + $0xc] sm:$0xf]
        %v1874 = vld [vmem:[%s13 + $0x10] sm:$0xf]
        %v1875 = vld [vmem:[%s13 + $0x14] sm:$0xf]
        %v1876 = vld [vmem:[%s13 + $0x18] sm:$0xf]
        %v1877 = vld [vmem:[%s13 + $0x1c] sm:$0xf]
        %v1878 = vld [vmem:[%s13 + $0x20] sm:$0xf]
        %v1879 = vld [vmem:[%s13 + $0x24] sm:$0xf]
        %v1880 = vld [vmem:[%s13 + $0x28] sm:$0xf]
        %v1881 = vld [vmem:[%s13 + $0x2c] sm:$0xf]
        %v1882 = vld [vmem:[%s13 + $0x30] sm:$0xf]
        %v1883 = vld [vmem:[%s13 + $0x34] sm:$0xf]
        %v1884 = vld [vmem:[%s13 + $0x38] sm:$0xf]
        %v1885 = vld [vmem:[%s13 + $0x3c] sm:$0xf]
        %v1886 = vld [vmem:[#allocation19] sm:$0x1]
        %v1888 = vperm.slane %v1886, 0
        %v1906 = vunpack.c.l.b16 %v1870
        %v1907 = vunpack.c.l.b16 %v1871
        %v1908 = vunpack.c.l.b16 %v1872
        %v1909 = vunpack.c.l.b16 %v1873
        %v1910 = vunpack.c.l.b16 %v1874
        %v1911 = vunpack.c.l.b16 %v1875
        %v1912 = vunpack.c.l.b16 %v1876
        %v1913 = vunpack.c.l.b16 %v1877
        %v1914 = vunpack.c.l.b16 %v1878
        %v1915 = vunpack.c.l.b16 %v1879
        %v1916 = vunpack.c.l.b16 %v1880
        %v1917 = vunpack.c.l.b16 %v1881
        %v1918 = vunpack.c.l.b16 %v1882
        %v1919 = vunpack.c.l.b16 %v1883
        %v1920 = vunpack.c.l.b16 %v1884
        %v1921 = vunpack.c.l.b16 %v1885
        %v1922 = vpack.c.b16 %v1907, %v1906
        %v1923 = vpack.c.b16 %v1909, %v1908
        %v1924 = vpack.c.b16 %v1911, %v1910
        %v1925 = vpack.c.b16 %v1913, %v1912
        %v1926 = vpack.c.b16 %v1915, %v1914
        %v1927 = vpack.c.b16 %v1917, %v1916
        %v1928 = vpack.c.b16 %v1919, %v1918
        %v1929 = vpack.c.b16 %v1921, %v1920
        %1938 = vmatpush.bf16.msra.mxu0 %v1929
        %1939 = vmatpush.bf16.msra.mxu0 %v1928
        %1940 = vmatpush.bf16.msra.mxu0 %v1927
        %1941 = vmatpush.bf16.msra.mxu0 %v1926
        %1942 = vmatpush.bf16.msra.mxu0 %v1925
        %1943 = vmatpush.bf16.msra.mxu0 %v1924
        %1944 = vmatpush.bf16.msra.mxu0 %v1923
        %1945 = vmatpush.bf16.msra.mxu0 %v1922
        %1946 = vmatmul.bf16.gmra.mxu0 %v1868
        %v1947 = vpop.f32.mrf.mxu0
        %v1948 = vadd.f32 %v1888, %v1947
        %v1949 = vpop.f32.mrf.mxu0
        %v1950 = vadd.f32 %v1888, %v1949
        %1951 = vmatmul.bf16.gmra.mxu0 %v1869
        %v1952 = vpop.f32.mrf.mxu0
        %v1953 = vpop.f32.mrf.mxu0
        %1954 = vdwg.mxu0
        %v1955 = vadd.f32 %v1792, %v1948
        %v1956 = vadd.f32 %v1793, %v1950
        %v1957 = vld [vmem:[#allocation20] sm:$0x1]
        %v1958 = vld [vmem:[#allocation22] sm:$0x1]
        %v1959 = vsel %vm924, %v1955, 0.0
        %1960 = vadd.xlane.f32.xlu0 %v1959
        %v1961 = vpop.xlane.xlu0 %1960
        %v1962 = vsel %vm924, %v1956, 0.0
        %1963 = vadd.xlane.f32.xlu0 %v1962
        %v1964 = vpop.xlane.xlu0 %1963
        %v1965 = vmul.f32 %v1961, %v1725
        %v1966 = vmul.f32 %v1964, %v1725
        %v1967 = vsub.f32 %v1955, %v1965
        %v1968 = vsub.f32 %v1956, %v1966
        %v1969 = vmul.f32 %v1967, %v1967
        %v1970 = vmul.f32 %v1968, %v1968
        %v1971 = vsel %vm924, %v1969, 0.0
        %1972 = vadd.xlane.f32.xlu0 %v1971
        %v1973 = vpop.xlane.xlu0 %1972
        %v1974 = vsel %vm924, %v1970, 0.0
        %1975 = vadd.xlane.f32.xlu0 %v1974
        %v1976 = vpop.xlane.xlu0 %1975
        %v1977 = vmul.f32 %v1973, %v1725
        %v1978 = vmul.f32 %v1976, %v1725
        %v1979 = vadd.f32 %v1977, 1e-05
        %v1980 = vadd.f32 %v1978, 1e-05
        %v1981 = vrsqrt.pop %v1979
        %v1982 = vmul.f32 %v1981, %v1979
        %v1983 = vmul.f32 %v1982, %v1981
        %v1984 = vmul.f32 0.5, %v1983
        %v1985 = vsub.f32 1.5, %v1984
        %v1986 = vmul.f32 %v1981, %v1985
        %vm1987 = vweird.f32 %v1979
        %vm1988 = vweird.f32 %v1981
        %vm1989 = vmor %vm1987, %vm1988
        %v1990 = vsel %vm1989, %v1981, %v1986
        %v1991 = vrsqrt.pop %v1980
        %v1992 = vmul.f32 %v1991, %v1980
        %v1993 = vmul.f32 %v1992, %v1991
        %v1994 = vmul.f32 0.5, %v1993
        %v1995 = vsub.f32 1.5, %v1994
        %v1996 = vmul.f32 %v1991, %v1995
        %vm1997 = vweird.f32 %v1980
        %vm1998 = vweird.f32 %v1991
        %vm1999 = vmor %vm1997, %vm1998
        %v2000 = vsel %vm1999, %v1991, %v1996
        %v2001 = vmul.f32 %v1967, %v1990
        %v2002 = vmul.f32 %v1968, %v2000
        %v2004 = vperm.slane %v1957, 0
        %v2006 = vmul.f32 %v2001, %v2004
        %v2007 = vmul.f32 %v2002, %v2004
        %v2009 = vperm.slane %v1958, 0
        %v2011 = vadd.f32 %v2006, %v2009
        %v2012 = vadd.f32 %v2007, %v2009
        %2013 = vst.msk [vmem:[#allocation4] sm:$0x1] %vm922, %v2011
        %vm2014 = vcmask 254977
        %2015 = vst.msk [vmem:[#allocation4] sm:$0x2] %vm2014, %v2012
        %v2016 = vld [vmem:[#allocation4] sm:$0x3]
        %v2017 = vpack.c.bf16 %v2016, %v2016
        %v2018 = vld [vmem:[#allocation23] sm:$0xf]
        %v2019 = vld [vmem:[#allocation23 + $0x4] sm:$0xf]
        %v2020 = vld [vmem:[#allocation23 + $0x8] sm:$0xf]
        %v2021 = vld [vmem:[#allocation23 + $0xc] sm:$0xf]
        %v2022 = vld [vmem:[#allocation25] sm:$0x1]
        %v2024 = vperm.slane %v2022, 0
        %v2030 = vunpack.c.l.b16 %v2018
        %v2031 = vunpack.c.l.b16 %v2019
        %v2032 = vunpack.c.l.b16 %v2020
        %v2033 = vunpack.c.l.b16 %v2021
        %v2034 = vpack.c.b16 %v2031, %v2030
        %v2035 = vpack.c.b16 %v2033, %v2032
        %v2039 = vsel %vm924, %v2017, 0
        %2041 = vmatpush.bf16.msra.mxu0 0
        %2042 = vmatpush.bf16.msra.mxu0 0
        %2043 = vmatpush.bf16.msra.mxu0 0
        %2044 = vmatpush.bf16.msra.mxu0 0
        %2045 = vmatpush.bf16.msra.mxu0 0
        %2046 = vmatpush.bf16.msra.mxu0 0
        %2047 = vmatpush.bf16.msra.mxu0 %v2035
        %2048 = vmatpush.bf16.msra.mxu0 %v2034
        %2049 = vmatmul.bf16.gmra.mxu0 %v2039
        %v2050 = vpop.f32.mrf.mxu0
        %v2051 = vadd.f32 %v2024, %v2050
        %v2052 = vpop.f32.mrf.mxu0
        %2053 = vdwg.mxu0
        %v2054 = vxor.u32 %v2051, 2147483648
        %v2055 = vmul.f32 %v2054, 1.442695
        %v2056 = vpow.pop %v2055
        %v2057 = vadd.f32 %v2056, 1.0
        %v2058 = vrcp.pop %v2057
        %v2059 = vmul.f32 %v2057, %v2058
        %v2060 = vsub.f32 1.0, %v2059
        %v2061 = vmul.f32 %v2058, %v2060
        %v2062 = vadd.f32 %v2058, %v2061
        %vm2063 = vweird.f32 %v2057
        %vm2064 = vweird.f32 %v2058
        %vm2065 = vmor %vm2063, %vm2064
        %v2066 = vsel %vm2065, %v2058, %v2062
        %v2067 = vand.u32 2147483647, %v2057
        %vm2068 = vcmp.eq.f32.partialorder %v2067, 8.507059e+37
        %v2069 = vand.u32 %v2057, 2147483648
        %v2070 = vor.u32 1.1754944e-38, %v2069
        %v2071 = vsel %vm2068, %v2070, %v2066
        %v2072 = vmul.f32 1.0, %v2071
        %v2073 = vmul.f32 %v2051, %v2072
        %v2074 = vpack.c.bf16 %v2073, %v2073
        %v2075 = vld [vmem:[%s19] sm:$0xf]
        %v2076 = vld [vmem:[%s19 + $0x4] sm:$0xf]
        %v2077 = vld [vmem:[%s19 + $0x8] sm:$0xf]
        %v2078 = vld [vmem:[%s19 + $0xc] sm:$0xf]
        %v2079 = vld [vmem:[%s20] sm:$0x1]
        %v2081 = vperm.slane %v2079, 0
        %v2087 = vunpack.c.l.b16 %v2075
        %v2088 = vunpack.c.l.b16 %v2076
        %v2089 = vunpack.c.l.b16 %v2077
        %v2090 = vunpack.c.l.b16 %v2078
        %v2091 = vpack.c.b16 %v2088, %v2087
        %v2092 = vpack.c.b16 %v2090, %v2089
        %v2096 = vsel %vm924, %v2074, 0
        %2098 = vmatpush.bf16.msra.mxu0 0
        %2099 = vmatpush.bf16.msra.mxu0 0
        %2100 = vmatpush.bf16.msra.mxu0 0
        %2101 = vmatpush.bf16.msra.mxu0 0
        %2102 = vmatpush.bf16.msra.mxu0 0
        %2103 = vmatpush.bf16.msra.mxu0 0
        %2104 = vmatpush.bf16.msra.mxu0 %v2092
        %2105 = vmatpush.bf16.msra.mxu0 %v2091
        %2106 = vmatmul.bf16.gmra.mxu0 %v2096
        %v2107 = vpop.f32.mrf.mxu0
        %v2108 = vadd.f32 %v2081, %v2107
        %v2109 = vpop.f32.mrf.mxu0
        %2110 = vdwg.mxu0
        %2111 = vst [vmem:[%s869] sm:$0x3] %v2108
        %s2112 = sand.u32 %s498, 1
        %s2113 = scalar_lea.sflag [#allocation7], %s2112
        %s2114 = sand.u32 %s498, 1
        %s2115 = smul.addr %s2114, 2
        %s2116 = scalar_lea.vmem [#allocation26], %s2115
        %p2117 = scmp.lt.s32.totalorder %s44, 1
        %s2118 = scalar_select %p2117, %s44, 1
        %s2119 = smul.addr %s2118, 4
        %s2120 = smul.addr %s2119, 8
        %s2121 = scalar_lea.vmem %s22, %s2120
        // Predicated region
        $region157: #{tpu_custom_call.1} parent=103 // pred_check
          %p2122 = pneg %p508
        $region158: #{tpu_custom_call.1} parent=103 // pred_check_branch
          %2124 = sbr.rel (%p2122) target = $region160
        $region159: #{tpu_custom_call.1} parent=103 // pred_region
          %2126 = vsyncadd %s2113, 0
          %s2127 = smul.addr %s44, 2
          %s2128 = scalar_lea.hbm %s21, %s2127
          %s2130 = sshll.u32 %s2116, 4
          %s2131 = int_to_ptr.vmem [resolvable:$true] %s2130
          %s2132 = sshll.u32 %s2128, 4
          %s2133 = int_to_ptr.hbm [resolvable:$true] %s2132
          %2135 = dma.vmem_to_hbm [thread:$0]  %s2131, 32, %s2133, %s2113
        $region160: #{tpu_custom_call.1} parent=103 // pred_fallthru
          _
        // Predicated region
        $region161: #{tpu_custom_call.1} parent=103 // pred_check
          %p2136 = pneg %p534
        $region162: #{tpu_custom_call.1} parent=103 // pred_check_branch
          %2138 = sbr.rel (%p2136) target = $region164
        $region163: #{tpu_custom_call.1} parent=103 // pred_region
          _
        $region164: #{tpu_custom_call.1} parent=103 // pred_fallthru
          _
      $region104: #{tpu_custom_call.1} parent=5 // pred_fallthru
        _
      %p2139 = scmp.le.s32.totalorder 2, %s39
      // Predicated region
      $region165: #{tpu_custom_call.1} parent=5 // pred_check
        %p2140 = pneg %p2139
      $region166: #{tpu_custom_call.1} parent=5 // pred_check_branch
        %2142 = sbr.rel (%p2140) target = $region168
      $region167: #{tpu_custom_call.1} parent=5 // pred_region
        %s2143 = ssub.s32 %s39, 2
        // Predicated region
        $region169: #{tpu_custom_call.1} parent=167 // pred_check
          %p2144 = pneg %p514
        $region170: #{tpu_custom_call.1} parent=167 // pred_check_branch
          %2146 = sbr.rel (%p2144) target = $region172
        $region171: #{tpu_custom_call.1} parent=167 // pred_region
          %s2147 = sand.u32 %s499, 1
          %s2148 = scalar_lea.sflag [#allocation7], %s2147
          %s2149 = sand.u32 %s499, 1
          %s2150 = smul.addr %s2149, 2
          %s2151 = scalar_lea.vmem [#allocation26], %s2150
          %2153 = dma.done %s2148, 32
        $region172: #{tpu_custom_call.1} parent=167 // pred_fallthru
          _
        // Predicated region
        $region173: #{tpu_custom_call.1} parent=167 // pred_check
          %p2154 = pneg %p540
        $region174: #{tpu_custom_call.1} parent=167 // pred_check_branch
          %2156 = sbr.rel (%p2154) target = $region176
        $region175: #{tpu_custom_call.1} parent=167 // pred_region
          %p2157 = scmp.lt.s32.totalorder %s45, 1
          %s2158 = scalar_select %p2157, %s45, 1
          %s2159 = smul.addr %s2158, 4
          %s2160 = smul.addr %s2159, 8
          %s2161 = scalar_lea.vmem %s22, %s2160
        $region176: #{tpu_custom_call.1} parent=167 // pred_fallthru
          _
      $region168: #{tpu_custom_call.1} parent=5 // pred_fallthru
        _
    $region6: #{tpu_custom_call.1} parent=1 // loop_footer
      %s43 = sadd.s32 1, %s39
    $region7: #{tpu_custom_call.1} parent=1 // loop_footer_branch
      %38 = sbr.rel target = $region3
    $region8: #{tpu_custom_call.1} parent=1 // loop_exit
      _
    %2162 = vsyncpa [#allocation6], 1
    %s2163 = scalar_lea.sflag [#allocation6], 1
    %2164 = vsyncpa %s2163, 1
    %2165 = vsyncpa [#allocation9], 1
    %2166 = vsyncpa [#allocation12], 1
    %2167 = vsyncpa [#allocation15], 1
    %2168 = vsyncpa [#allocation18], 1
    %2169 = vsyncpa [#allocation21], 1
    %2170 = vsyncpa [#allocation24], 1
    %2171 = vsyncpa [#allocation7], 1
    %s2172 = scalar_lea.sflag [#allocation7], 1
    %2173 = vsyncpa %s2172, 1

</llo_original>
